<compile_context>
chip_gen: v7x
topology: tpu7x:2x2x1
jax: 0.10.0
libtpu: 0.0.40
codegen_flags: <defaults>
</compile_context>

<pallas_src>
from functools import partial

import jax
import jax.numpy as jnp
from jax import lax
from jax.experimental import pallas as pl
from jax.experimental.pallas import tpu as pltpu

_LANE = 128


def _conv_taps(xs, wv, *, th, w_out, kh, kw, cin):
    """Conv of one padded row-slab as kh*kw shifted tap matmuls (f32 accumulate).

    xs: (th + kh - 1, w_out + kw - 1, cin) bf16 slab (already spatially padded).
    wv: (kh*kw*cin, cpad) bf16, row order (i, j, ci).
    returns (th * w_out, cpad) f32.
    """
    cpad = wv.shape[1]
    y = jnp.zeros((th * w_out, cpad), jnp.float32)
    for i in range(kh):
        for j in range(kw):
            xt = xs[i:i + th, j:j + w_out, :].reshape(th * w_out, cin)
            wt = wv[(i * kw + j) * cin:(i * kw + j + 1) * cin, :]
            y = y + jnp.dot(xt, wt, preferred_element_type=jnp.float32)
    return y


def _stats_kernel(slab_ref, w_ref, stats_ref, *, th, w_out, kh, kw, cin):
    """Pass 1: per-channel sum (row 0) and sum-of-squares (row 1) of the conv
    output, accumulated across the whole grid into one resident VMEM block."""
    @pl.when(jnp.logical_and(pl.program_id(0) == 0, pl.program_id(1) == 0))
    def _():
        stats_ref[...] = jnp.zeros_like(stats_ref)

    y = _conv_taps(slab_ref[...], w_ref[...],
                   th=th, w_out=w_out, kh=kh, kw=kw, cin=cin)
    ssum = jnp.sum(y, axis=0, keepdims=True)         # (1, cpad)
    ssq = jnp.sum(y * y, axis=0, keepdims=True)      # (1, cpad)
    fill = jnp.zeros((stats_ref.shape[0] - 2, stats_ref.shape[1]), jnp.float32)
    stats_ref[...] += jnp.concatenate([ssum, ssq, fill], axis=0)


def _norm_kernel(slab_ref, w_ref, scale_ref, shift_ref, o_ref,
                 *, th, w_out, kh, kw, cin):
    """Pass 2: recompute conv for this tile, folded BN as one FMA + ReLU,
    lane-dense (th, w, cpad) store."""
    y = _conv_taps(slab_ref[...], w_ref[...],
                   th=th, w_out=w_out, kh=kh, kw=kw, cin=cin)
    out = jnp.maximum(y * scale_ref[...] + shift_ref[...], 0.0)
    o_ref[...] = out.reshape(th, w_out, o_ref.shape[-1]).astype(o_ref.dtype)


def _pick_row_tile(h, w, cin, cpad, pad, budget_bytes=8 * 1024 * 1024):
    """Largest divisor of H whose per-tile working set (double-buffered bf16 slab
    + f32 conv tile + double-buffered f32 output tile) fits a conservative budget
    that is safe under the scoped-VMEM defaults of v5e/v6e/v7x."""
    wp = w + 2 * pad
    for th in range(h, 0, -1):
        if h % th:
            continue
        slab_b = (th + 2 * pad) * wp * cin * 2      # bf16
        tile_b = th * w * cpad * 4                  # f32
        if 2 * slab_b + 3 * tile_b <= budget_bytes:
            return th
    return 1


def conv_norm_act(x_nchw, weight_oihw, gamma, beta, *, eps=1e-5):
    """Forward of ConvNormAct. x: (N, Cin, H, W) f32 -> (N, Cout, H, W) f32."""
    n, cin, h, w = x_nchw.shape
    cout, cin_w, kh, kw = weight_oihw.shape
    assert cin_w == cin
    pad = kh // 2
    wp = w + 2 * pad
    cpad = ((cout + _LANE - 1) // _LANE) * _LANE

    # --- wrapper-side glue: NCHW -> NHWC, spatial pad, halo'd row slabs, bf16 ---
    x_nhwc = jnp.transpose(x_nchw, (0, 2, 3, 1))
    xp = jnp.pad(x_nhwc, ((0, 0), (pad, pad), (pad, pad), (0, 0)))

    th = _pick_row_tile(h, w, cin, cpad, pad)
    nrb = h // th
    slabs = jnp.stack(
        [xp[:, r * th:r * th + th + 2 * pad] for r in range(nrb)], axis=1
    ).astype(jnp.bfloat16)                          # (N, nrb, th+2p, W+2p, Cin)

    # weight (Cout, Cin, KH, KW) -> (KH, KW, Cin, Cout) -> (K, Cpad), bf16.
    w_mat = jnp.transpose(weight_oihw, (2, 3, 1, 0)).reshape(kh * kw * cin, cout)
    w_mat = jnp.pad(w_mat, ((0, 0), (0, cpad - cout))).astype(jnp.bfloat16)

    slab_spec = pl.BlockSpec((None, None, th + 2 * pad, wp, cin),
                             lambda b, r: (b, r, 0, 0, 0))
    w_spec = pl.BlockSpec((kh * kw * cin, cpad), lambda b, r: (0, 0))

    # ---------------- pass 1: batch-norm statistics ----------------
    stats = pl.pallas_call(
        partial(_stats_kernel, th=th, w_out=w, kh=kh, kw=kw, cin=cin),
        out_shape=jax.ShapeDtypeStruct((8, cpad), jnp.float32),
        grid=(n, nrb),
        in_specs=[slab_spec, w_spec],
        out_specs=pl.BlockSpec((8, cpad), lambda b, r: (0, 0)),
        compiler_params=pltpu.CompilerParams(
            dimension_semantics=("arbitrary", "arbitrary"),
            vmem_limit_bytes=32 * 1024 * 1024),
    )(slabs, w_mat)

    m_total = n * h * w
    mean = stats[0, :cout] / m_total
    var = jnp.maximum(stats[1, :cout] / m_total - mean * mean, 0.0)  # biased var
    a = gamma.astype(jnp.float32) * lax.rsqrt(var + eps)
    b = beta.astype(jnp.float32) - mean * a
    a_pad = jnp.pad(a, (0, cpad - cout)).reshape(1, cpad)
    b_pad = jnp.pad(b, (0, cpad - cout)).reshape(1, cpad)

    # ---------------- pass 2: normalize + affine + ReLU ----------------
    out_pad = pl.pallas_call(
        partial(_norm_kernel, th=th, w_out=w, kh=kh, kw=kw, cin=cin),
        out_shape=jax.ShapeDtypeStruct((n, h, w, cpad), jnp.float32),
        grid=(n, nrb),
        in_specs=[
            slab_spec,
            w_spec,
            pl.BlockSpec((1, cpad), lambda b, r: (0, 0)),
            pl.BlockSpec((1, cpad), lambda b, r: (0, 0)),
        ],
        out_specs=pl.BlockSpec((None, th, w, cpad), lambda b, r: (b, r, 0, 0)),
        compiler_params=pltpu.CompilerParams(
            dimension_semantics=("parallel", "parallel"),
            vmem_limit_bytes=32 * 1024 * 1024),
    )(slabs, w_mat, a_pad, b_pad)

    out_nhwc = out_pad[..., :cout]
    return jnp.transpose(out_nhwc, (0, 3, 1, 2))    # back to NCHW


def _reference(x_nchw, weight_oihw, gamma, beta, eps=1e-5):
    """Plain-JAX reference mirroring the PyTorch forward (training-mode BN).
    Inputs are quantized to bf16 (matching the kernel's matmul input precision)
    and accumulated in true f32."""
    xq = x_nchw.astype(jnp.bfloat16).astype(jnp.float32)
    wq = weight_oihw.astype(jnp.bfloat16).astype(jnp.float32)
    y = lax.conv_general_dilated(
        xq, wq, window_strides=(1, 1), padding="SAME",
        dimension_numbers=("NCHW", "OIHW", "NCHW"),
        precision=lax.Precision.HIGHEST)
    mean = jnp.mean(y, axis=(0, 2, 3), keepdims=True)
    var = jnp.mean((y - mean) ** 2, axis=(0, 2, 3), keepdims=True)
    y = (y - mean) * lax.rsqrt(var + eps)
    y = y * gamma.reshape(1, -1, 1, 1) + beta.reshape(1, -1, 1, 1)
    return jnp.maximum(y, 0.0)


if __name__ == "__main__":
    key = jax.random.PRNGKey(0)
    k_x, k_w = jax.random.split(key)

    N, CIN, H, W = 2, 4, 16, 16
    COUT, KS = 8, 3

    x = jax.random.normal(k_x, (N, CIN, H, W), dtype=jnp.float32)
    fan_in = CIN * KS * KS
    bound = (1.0 / fan_in) ** 0.5
    weight = jax.random.uniform(
        k_w, (COUT, CIN, KS, KS), dtype=jnp.float32, minval=-bound, maxval=bound)
    # BatchNorm2d default init: gamma=1, beta=0.
    gamma = jnp.ones((COUT,), dtype=jnp.float32)
    beta = jnp.zeros((COUT,), dtype=jnp.float32)

    out = conv_norm_act(x, weight, gamma, beta)
    out = jax.block_until_ready(out)

    ref = _reference(x, weight, gamma, beta)
    assert out.shape == (N, COUT, H, W)
    err = float(jnp.max(jnp.abs(out - ref)))
    assert jnp.allclose(out, ref, atol=2e-3, rtol=2e-3), err

    print("KERNEL_OK")
</pallas_src>

<mosaic_0001>
module attributes {stable_mosaic.version = 11 : i64} {
  func.func @_stats_kernel(%arg0: i32, %arg1: i32, %arg2: memref<1x1x18x18x4xbf16, #tpu.memory_space<vmem>>, %arg3: memref<36x128xbf16, #tpu.memory_space<vmem>>, %arg4: memref<8x128xf32, #tpu.memory_space<vmem>>) attributes {dimension_semantics = [#tpu.dimension_semantics<arbitrary>, #tpu.dimension_semantics<arbitrary>], iteration_bounds = array<i64: 2, 1>, scalar_prefetch = 0 : i64, scratch_operands = 0 : i64, tpu.core_type = #tpu.core_type<tc>, window_params = [{transform_indices = @transform_0, window_bounds = array<i64: 1, 1, 18, 18, 4>}, {pipeline_mode = #tpu.pipeline_mode<synchronous>, transform_indices = @transform_1, window_bounds = array<i64: 36, 128>}, {pipeline_mode = #tpu.pipeline_mode<synchronous>, transform_indices = @transform_2, window_bounds = array<i64: 8, 128>}]} {
    %c0_i32 = arith.constant 0 : i32
    %0 = arith.cmpi eq, %arg0, %c0_i32 : i32
    %c0_i32_0 = arith.constant 0 : i32
    %1 = arith.cmpi eq, %arg1, %c0_i32_0 : i32
    %2 = arith.andi %0, %1 : i1
    %3 = arith.extui %2 : i1 to i32
    %c0_i32_1 = arith.constant 0 : i32
    %4 = arith.cmpi ne, %3, %c0_i32_1 : i32
    scf.if %4 {
      %cst_24 = arith.constant 0.000000e+00 : f32
      %64 = vector.broadcast %cst_24 : f32 to vector<8x128xf32>
      %c0_25 = arith.constant 0 : index
      %c0_26 = arith.constant 0 : index
      %65 = vector.load %arg4[%c0_25, %c0_26] : memref<8x128xf32, #tpu.memory_space<vmem>>, vector<8x128xf32>
      tpu.vector_store %arg4[%c0_25, %c0_26], %64 {strides = array<i32>} : memref<8x128xf32, #tpu.memory_space<vmem>>, vector<8x128xf32>,
    } else {
    }
    %c0 = arith.constant 0 : index
    %c0_2 = arith.constant 0 : index
    %c0_3 = arith.constant 0 : index
    %c0_4 = arith.constant 0 : index
    %c0_5 = arith.constant 0 : index
    %5 = vector.load %arg2[%c0, %c0_2, %c0_3, %c0_4, %c0_5] : memref<1x1x18x18x4xbf16, #tpu.memory_space<vmem>>, vector<1x1x18x18x4xbf16>
    %6 = vector.shape_cast %5 : vector<1x1x18x18x4xbf16> to vector<18x18x4xbf16>
    %c0_6 = arith.constant 0 : index
    %c0_7 = arith.constant 0 : index
    %7 = vector.load %arg3[%c0_6, %c0_7] : memref<36x128xbf16, #tpu.memory_space<vmem>>, vector<36x128xbf16>
    %cst = arith.constant 0.000000e+00 : f32
    %8 = vector.broadcast %cst : f32 to vector<256x128xf32>
    %9 = vector.extract_strided_slice %6 {offsets = [0, 0, 0], sizes = [16, 16, 4], strides = [1, 1, 1]} : vector<18x18x4xbf16> to vector<16x16x4xbf16>
    %10 = vector.shape_cast %9 : vector<16x16x4xbf16> to vector<256x4xbf16>
    %11 = vector.extract_strided_slice %7 {offsets = [0, 0], sizes = [4, 128], strides = [1, 1]} : vector<36x128xbf16> to vector<4x128xbf16>
    %cst_8 = arith.constant dense<0.000000e+00> : vector<256x128xf32>
    %12 = tpu.matmul %10, %11, %cst_8 {dimension_numbers = #tpu.dot_dimension_numbers<[1], [0], [0], [1], [0, 0, 1, 1], [], []>} : vector<256x4xbf16>, vector<4x128xbf16>, vector<256x128xf32> -> vector<256x128xf32>
    %13 = arith.addf %8, %12 : vector<256x128xf32>
    %14 = vector.extract_strided_slice %6 {offsets = [0, 1, 0], sizes = [16, 16, 4], strides = [1, 1, 1]} : vector<18x18x4xbf16> to vector<16x16x4xbf16>
    %15 = vector.shape_cast %14 : vector<16x16x4xbf16> to vector<256x4xbf16>
    %16 = vector.extract_strided_slice %7 {offsets = [4, 0], sizes = [4, 128], strides = [1, 1]} : vector<36x128xbf16> to vector<4x128xbf16>
    %cst_9 = arith.constant dense<0.000000e+00> : vector<256x128xf32>
    %17 = tpu.matmul %15, %16, %cst_9 {dimension_numbers = #tpu.dot_dimension_numbers<[1], [0], [0], [1], [0, 0, 1, 1], [], []>} : vector<256x4xbf16>, vector<4x128xbf16>, vector<256x128xf32> -> vector<256x128xf32>
    %18 = arith.addf %13, %17 : vector<256x128xf32>
    %19 = vector.extract_strided_slice %6 {offsets = [0, 2, 0], sizes = [16, 16, 4], strides = [1, 1, 1]} : vector<18x18x4xbf16> to vector<16x16x4xbf16>
    %20 = vector.shape_cast %19 : vector<16x16x4xbf16> to vector<256x4xbf16>
    %21 = vector.extract_strided_slice %7 {offsets = [8, 0], sizes = [4, 128], strides = [1, 1]} : vector<36x128xbf16> to vector<4x128xbf16>
    %cst_10 = arith.constant dense<0.000000e+00> : vector<256x128xf32>
    %22 = tpu.matmul %20, %21, %cst_10 {dimension_numbers = #tpu.dot_dimension_numbers<[1], [0], [0], [1], [0, 0, 1, 1], [], []>} : vector<256x4xbf16>, vector<4x128xbf16>, vector<256x128xf32> -> vector<256x128xf32>
    %23 = arith.addf %18, %22 : vector<256x128xf32>
    %24 = vector.extract_strided_slice %6 {offsets = [1, 0, 0], sizes = [16, 16, 4], strides = [1, 1, 1]} : vector<18x18x4xbf16> to vector<16x16x4xbf16>
    %25 = vector.shape_cast %24 : vector<16x16x4xbf16> to vector<256x4xbf16>
    %26 = vector.extract_strided_slice %7 {offsets = [12, 0], sizes = [4, 128], strides = [1, 1]} : vector<36x128xbf16> to vector<4x128xbf16>
    %cst_11 = arith.constant dense<0.000000e+00> : vector<256x128xf32>
    %27 = tpu.matmul %25, %26, %cst_11 {dimension_numbers = #tpu.dot_dimension_numbers<[1], [0], [0], [1], [0, 0, 1, 1], [], []>} : vector<256x4xbf16>, vector<4x128xbf16>, vector<256x128xf32> -> vector<256x128xf32>
    %28 = arith.addf %23, %27 : vector<256x128xf32>
    %29 = vector.extract_strided_slice %6 {offsets = [1, 1, 0], sizes = [16, 16, 4], strides = [1, 1, 1]} : vector<18x18x4xbf16> to vector<16x16x4xbf16>
    %30 = vector.shape_cast %29 : vector<16x16x4xbf16> to vector<256x4xbf16>
    %31 = vector.extract_strided_slice %7 {offsets = [16, 0], sizes = [4, 128], strides = [1, 1]} : vector<36x128xbf16> to vector<4x128xbf16>
    %cst_12 = arith.constant dense<0.000000e+00> : vector<256x128xf32>
    %32 = tpu.matmul %30, %31, %cst_12 {dimension_numbers = #tpu.dot_dimension_numbers<[1], [0], [0], [1], [0, 0, 1, 1], [], []>} : vector<256x4xbf16>, vector<4x128xbf16>, vector<256x128xf32> -> vector<256x128xf32>
    %33 = arith.addf %28, %32 : vector<256x128xf32>
    %34 = vector.extract_strided_slice %6 {offsets = [1, 2, 0], sizes = [16, 16, 4], strides = [1, 1, 1]} : vector<18x18x4xbf16> to vector<16x16x4xbf16>
    %35 = vector.shape_cast %34 : vector<16x16x4xbf16> to vector<256x4xbf16>
    %36 = vector.extract_strided_slice %7 {offsets = [20, 0], sizes = [4, 128], strides = [1, 1]} : vector<36x128xbf16> to vector<4x128xbf16>
    %cst_13 = arith.constant dense<0.000000e+00> : vector<256x128xf32>
    %37 = tpu.matmul %35, %36, %cst_13 {dimension_numbers = #tpu.dot_dimension_numbers<[1], [0], [0], [1], [0, 0, 1, 1], [], []>} : vector<256x4xbf16>, vector<4x128xbf16>, vector<256x128xf32> -> vector<256x128xf32>
    %38 = arith.addf %33, %37 : vector<256x128xf32>
    %39 = vector.extract_strided_slice %6 {offsets = [2, 0, 0], sizes = [16, 16, 4], strides = [1, 1, 1]} : vector<18x18x4xbf16> to vector<16x16x4xbf16>
    %40 = vector.shape_cast %39 : vector<16x16x4xbf16> to vector<256x4xbf16>
    %41 = vector.extract_strided_slice %7 {offsets = [24, 0], sizes = [4, 128], strides = [1, 1]} : vector<36x128xbf16> to vector<4x128xbf16>
    %cst_14 = arith.constant dense<0.000000e+00> : vector<256x128xf32>
    %42 = tpu.matmul %40, %41, %cst_14 {dimension_numbers = #tpu.dot_dimension_numbers<[1], [0], [0], [1], [0, 0, 1, 1], [], []>} : vector<256x4xbf16>, vector<4x128xbf16>, vector<256x128xf32> -> vector<256x128xf32>
    %43 = arith.addf %38, %42 : vector<256x128xf32>
    %44 = vector.extract_strided_slice %6 {offsets = [2, 1, 0], sizes = [16, 16, 4], strides = [1, 1, 1]} : vector<18x18x4xbf16> to vector<16x16x4xbf16>
    %45 = vector.shape_cast %44 : vector<16x16x4xbf16> to vector<256x4xbf16>
    %46 = vector.extract_strided_slice %7 {offsets = [28, 0], sizes = [4, 128], strides = [1, 1]} : vector<36x128xbf16> to vector<4x128xbf16>
    %cst_15 = arith.constant dense<0.000000e+00> : vector<256x128xf32>
    %47 = tpu.matmul %45, %46, %cst_15 {dimension_numbers = #tpu.dot_dimension_numbers<[1], [0], [0], [1], [0, 0, 1, 1], [], []>} : vector<256x4xbf16>, vector<4x128xbf16>, vector<256x128xf32> -> vector<256x128xf32>
    %48 = arith.addf %43, %47 : vector<256x128xf32>
    %49 = vector.extract_strided_slice %6 {offsets = [2, 2, 0], sizes = [16, 16, 4], strides = [1, 1, 1]} : vector<18x18x4xbf16> to vector<16x16x4xbf16>
    %50 = vector.shape_cast %49 : vector<16x16x4xbf16> to vector<256x4xbf16>
    %51 = vector.extract_strided_slice %7 {offsets = [32, 0], sizes = [4, 128], strides = [1, 1]} : vector<36x128xbf16> to vector<4x128xbf16>
    %cst_16 = arith.constant dense<0.000000e+00> : vector<256x128xf32>
    %52 = tpu.matmul %50, %51, %cst_16 {dimension_numbers = #tpu.dot_dimension_numbers<[1], [0], [0], [1], [0, 0, 1, 1], [], []>} : vector<256x4xbf16>, vector<4x128xbf16>, vector<256x128xf32> -> vector<256x128xf32>
    %53 = arith.addf %48, %52 : vector<256x128xf32>
    %cst_17 = arith.constant dense<0.000000e+00> : vector<128xf32>
    %54 = vector.multi_reduction <add>, %53, %cst_17 [0] : vector<256x128xf32> to vector<128xf32>
    %55 = vector.shape_cast %54 : vector<128xf32> to vector<1x128xf32>
    %56 = arith.mulf %53, %53 : vector<256x128xf32>
    %cst_18 = arith.constant dense<0.000000e+00> : vector<128xf32>
    %57 = vector.multi_reduction <add>, %56, %cst_18 [0] : vector<256x128xf32> to vector<128xf32>
    %58 = vector.shape_cast %57 : vector<128xf32> to vector<1x128xf32>
    %cst_19 = arith.constant 0.000000e+00 : f32
    %59 = vector.broadcast %cst_19 : f32 to vector<6x128xf32>
    %c0_20 = arith.constant 0 : index
    %c0_21 = arith.constant 0 : index
    %60 = vector.load %arg4[%c0_20, %c0_21] : memref<8x128xf32, #tpu.memory_space<vmem>>, vector<8x128xf32>
    %61 = tpu.concatenate %55, %58, %59 in 0 : vector<1x128xf32>, vector<1x128xf32>, vector<6x128xf32> -> vector<8x128xf32>
    %62 = arith.addf %60, %61 : vector<8x128xf32>
    %c0_22 = arith.constant 0 : index
    %c0_23 = arith.constant 0 : index
    %63 = vector.load %arg4[%c0_22, %c0_23] : memref<8x128xf32, #tpu.memory_space<vmem>>, vector<8x128xf32>
    tpu.vector_store %arg4[%c0_22, %c0_23], %62 {strides = array<i32>} : memref<8x128xf32, #tpu.memory_space<vmem>>, vector<8x128xf32>,
    return
  }
  func.func @transform_0(%arg0: i32, %arg1: i32) -> (i32, i32, i32, i32, i32) {
    %c0_i32 = arith.constant 0 : i32
    %c0_i32_0 = arith.constant 0 : i32
    %c0_i32_1 = arith.constant 0 : i32
    %c0_i32_2 = arith.constant 0 : i32
    return %arg0, %arg1, %c0_i32, %c0_i32_0, %c0_i32_1 : i32, i32, i32, i32, i32
  }
  func.func @transform_1(%arg0: i32, %arg1: i32) -> (i32, i32) {
    %c0_i32 = arith.constant 0 : i32
    %c0_i32_0 = arith.constant 0 : i32
    %c0_i32_1 = arith.constant 0 : i32
    return %c0_i32, %c0_i32_0 : i32, i32
  }
  func.func @transform_2(%arg0: i32, %arg1: i32) -> (i32, i32) {
    %c0_i32 = arith.constant 0 : i32
    %c0_i32_0 = arith.constant 0 : i32
    %c0_i32_1 = arith.constant 0 : i32
    return %c0_i32, %c0_i32_0 : i32, i32
  }
}

</mosaic_0001>

<llo_original>
// kernel: tpu_custom_call.1
$region0: #{tpu_custom_call.1}
  #allocation0 [shape = 'u32[]', space=smem, size = 0x4, offset = 0x4, fixed_abs, tag = 'smem constant byte address 0x4 - core index']
  #allocation1 [shape = 'u32[144,128]{1,0:T(1,128)}', space=vmem, size = 0x12000, scoped, tag = 'internal scratch']
  %s0 = inlined_call_operand.vmem [shape: bf16[2,1,18,18,4], index: 0, kind: input, shape index: {}]
  %s1 = inlined_call_operand.vmem [shape: bf16[36,128], index: 1, kind: input, shape index: {}]
  %s2 = inlined_call_operand.hbm [shape: f32[8,128], index: 2, kind: output, shape index: {}]
  %s3 = sld [smem:[#allocation0]]
  $region45: #{tpu_custom_call.1} parent=0
    _
  %s5 = ssub.s32 1, %s3
  %s6 = scalar_select 0, %s5, %s3
  $region1: #{tpu_custom_call.1} parent=0
    #allocation2 [shape = 'u8[4096]{0}', space=vmem, size = 0x1000, scoped, tag = 'output window, operand 0, single buffered']
    #allocation3 [shape = 's32[2]{0}', space=sflag, size = 0x8, scoped, tag = 'scoped memory for tpu_custom_call.1']
    %7 = vsyncpa [#allocation3], 0
    loop: start=0, step=1, limit=4
    $region2: #{tpu_custom_call.1} parent=1 // loop_pre_header
      _
    $region3: #{tpu_custom_call.1} parent=1 // loop_header
      %s9 = sphi 0, %s13
      %p10 = scmp.ge.s32.totalorder %s9, 4
      %s16 = sphi 0, %s28
      %s17 = sphi 0, %s24
      %s18 = sphi 0, %s16
      %s19 = sphi 0, %s17
      %s20 = sphi 0, %s18
      %s21 = sphi 0, %s19
      %s33 = sphi 0, %s35
      %s36 = sphi 0, %s33
      %s37 = sphi 0, %s36
      %s53 = sphi 0, %s37
      %s57 = sphi 0, %s57
      %s59 = sphi 0, %s57
      %s60 = sphi 0, %s59
      %s74 = sphi 0, %s60
      %s78 = sphi 0, %s78
      %s80 = sphi 0, %s78
      %s81 = sphi 0, %s80
      %s95 = sphi 0, %s81
    $region4: #{tpu_custom_call.1} parent=1 // loop_header_branch
      %12 = sbr.rel (%p10) target = $region8
    $region5: #{tpu_custom_call.1} parent=1 // loop_body
      %s14 = ssub.s32 %s9, 1
      %s15 = ssub.s32 %s9, 2
      %s22 = sadd.s32 1, %s17
      %p23 = scmp.ge.s32.totalorder %s22, 1
      %s24 = scalar_select %p23, 0, %s22
      %s25 = sadd.s32 1, %s16
      %s26 = scalar_select %p23, %s25, %s16
      %p27 = scmp.ge.s32.totalorder %s26, 2
      %s28 = scalar_select %p27, 0, %s26
      %s29 = ssub.s32 %s16, %s28
      %s30 = ssub.s32 %s17, %s24
      %s31 = sor.u32 %s29, %s30
      %p32 = scmp.eq.s32.totalorder %s31, 0
      %s34 = sadd.s32 %s33, 1
      %s35 = scalar_select %p32, %s33, %s34
      %p38 = pneg %p32
      %p39 = scmp.eq.s32.totalorder %s9, 1
      %p40 = por %p38, %p39
      %p41 = scmp.ne.s32.totalorder %s33, %s36
      %p42 = scmp.eq.s32.totalorder %s9, 0
      %p43 = por %p41, %p42
      %p44 = scmp.ne.s32.totalorder %s33, %s36
      %p45 = scmp.eq.s32.totalorder %s14, 1
      %p46 = por %p44, %p45
      %p47 = scmp.ne.s32.totalorder %s36, %s37
      %p48 = scmp.eq.s32.totalorder %s14, 0
      %p49 = por %p47, %p48
      %p50 = scmp.ne.s32.totalorder %s36, %s37
      %p51 = scmp.eq.s32.totalorder %s15, 1
      %p52 = por %p50, %p51
      %p54 = scmp.ne.s32.totalorder %s37, %s53
      %p55 = scmp.eq.s32.totalorder %s15, 0
      %p56 = por %p54, %p55
      %s58 = sadd.s32 %s57, 1
      %p61 = scmp.eq.s32.totalorder %s9, 1
      %p62 = scmp.ne.s32.totalorder %s57, %s59
      %p63 = scmp.eq.s32.totalorder %s9, 0
      %p64 = por %p62, %p63
      %p65 = scmp.ne.s32.totalorder %s57, %s59
      %p66 = scmp.eq.s32.totalorder %s14, 1
      %p67 = por %p65, %p66
      %p68 = scmp.ne.s32.totalorder %s59, %s60
      %p69 = scmp.eq.s32.totalorder %s14, 0
      %p70 = por %p68, %p69
      %p71 = scmp.ne.s32.totalorder %s59, %s60
      %p72 = scmp.eq.s32.totalorder %s15, 1
      %p73 = por %p71, %p72
      %p75 = scmp.ne.s32.totalorder %s60, %s74
      %p76 = scmp.eq.s32.totalorder %s15, 0
      %p77 = por %p75, %p76
      %s79 = sadd.s32 %s78, 1
      %p82 = scmp.eq.s32.totalorder %s9, 1
      %p83 = scmp.ne.s32.totalorder %s78, %s80
      %p84 = scmp.eq.s32.totalorder %s9, 0
      %p85 = por %p83, %p84
      %p86 = scmp.ne.s32.totalorder %s78, %s80
      %p87 = scmp.eq.s32.totalorder %s14, 1
      %p88 = por %p86, %p87
      %p89 = scmp.ne.s32.totalorder %s80, %s81
      %p90 = scmp.eq.s32.totalorder %s14, 0
      %p91 = por %p89, %p90
      %p92 = scmp.ne.s32.totalorder %s80, %s81
      %p93 = scmp.eq.s32.totalorder %s15, 1
      %p94 = por %p92, %p93
      %p96 = scmp.ne.s32.totalorder %s81, %s95
      %p97 = scmp.eq.s32.totalorder %s15, 0
      %p98 = por %p96, %p97
      %p99 = scmp.le.s32.totalorder 1, %s9
      %p100 = scmp.lt.s32.totalorder %s9, 3
      %p101 = pnand %p99, %p100
      %p102 = pneg %p101
      // Predicated region
      $region9: #{tpu_custom_call.1} parent=5 // pred_check
        _
      $region10: #{tpu_custom_call.1} parent=5 // pred_check_branch
        %104 = sbr.rel (%p101) target = $region12
      $region11: #{tpu_custom_call.1} parent=5 // pred_region
        %s105 = ssub.s32 %s9, 1
        // Predicated region
        $region13: #{tpu_custom_call.1} parent=11 // pred_check
          %p106 = pneg %p70
        $region14: #{tpu_custom_call.1} parent=11 // pred_check_branch
          %108 = sbr.rel (%p106) target = $region16
        $region15: #{tpu_custom_call.1} parent=11 // pred_region
          _
        $region16: #{tpu_custom_call.1} parent=11 // pred_fallthru
          _
      $region12: #{tpu_custom_call.1} parent=5 // pred_fallthru
        _
      %p109 = scmp.lt.s32.totalorder %s9, 2
      // Predicated region
      $region17: #{tpu_custom_call.1} parent=5 // pred_check
        %p110 = pneg %p109
      $region18: #{tpu_custom_call.1} parent=5 // pred_check_branch
        %112 = sbr.rel (%p110) target = $region20
      $region19: #{tpu_custom_call.1} parent=5 // pred_region
        // Predicated region
        $region21: #{tpu_custom_call.1} parent=19 // pred_check
          %p113 = pneg %p43
        $region22: #{tpu_custom_call.1} parent=19 // pred_check_branch
          %115 = sbr.rel (%p113) target = $region24
        $region23: #{tpu_custom_call.1} parent=19 // pred_region
          %p116 = scmp.lt.s32.totalorder %s16, 1
          %s117 = scalar_select %p116, %s16, 1
          %p118 = scmp.lt.s32.totalorder %s17, 0
          %s119 = scalar_select %p118, %s17, 0
          %s120 = smul.addr %s119, 54
          %s121 = smul.addr %s117, 54
          %s122 = sadd.s32 %s120, %s121
          %s123 = smul.addr %s122, 4
          %s124 = scalar_lea.vmem %s0, %s123
        $region24: #{tpu_custom_call.1} parent=19 // pred_fallthru
          _
      $region20: #{tpu_custom_call.1} parent=5 // pred_fallthru
        _
      %p125 = scmp.le.s32.totalorder 1, %s9
      %p126 = scmp.lt.s32.totalorder %s9, 3
      %p127 = pnand %p125, %p126
      %p128 = pneg %p127
      // Predicated region
      $region25: #{tpu_custom_call.1} parent=5 // pred_check
        _
      $region26: #{tpu_custom_call.1} parent=5 // pred_check_branch
        %130 = sbr.rel (%p127) target = $region28
      $region27: #{tpu_custom_call.1} parent=5 // pred_region
        %s131 = ssub.s32 %s9, 1
        %p132 = scmp.lt.s32.totalorder %s18, 1
        %s133 = scalar_select %p132, %s18, 1
        %p134 = scmp.lt.s32.totalorder %s19, 0
        %s135 = scalar_select %p134, %s19, 0
        %s136 = smul.addr %s135, 54
        %s137 = smul.addr %s133, 54
        %s138 = sadd.s32 %s136, %s137
        %s139 = smul.addr %s138, 4
        %s140 = scalar_lea.vmem %s0, %s139
        %p141 = pneg %p49
        %p142 = pneg %p46
        %p143 = pneg %p70
        %p144 = pneg %p67
        %p145 = pneg %p91
        %p146 = pneg %p88
        %p147 = scmp.lt.s32.totalorder %s18, 1
        %s148 = scalar_select %p147, %s18, 1
        %p149 = scmp.lt.s32.totalorder %s19, 0
        %s150 = scalar_select %p149, %s19, 0
        %s151 = smul.addr %s150, 54
        %s152 = smul.addr %s148, 54
        %s153 = sadd.s32 %s151, %s152
        %s154 = smul.addr %s153, 4
        %s155 = scalar_lea.vmem %s0, %s154
        %p157 = scmp.eq.s32.totalorder %s18, 0
        %p158 = scmp.eq.s32.totalorder %s19, 0
        %p159 = pnand %p157, %p158
        %p160 = pneg %p159
        // Predicated region
        $region29: #{tpu_custom_call.1} parent=27 // pred_check
          _
        $region30: #{tpu_custom_call.1} parent=27 // pred_check_branch
          %162 = sbr.rel (%p159) target = $region32
        $region31: #{tpu_custom_call.1} parent=27 // pred_region
          %163 = vst [vmem:[#allocation2] sm:$0xff] 0.0
        $region32: #{tpu_custom_call.1} parent=27 // pred_fallthru
          _
        %v164 = vld [vmem:[%s155] sm:$0xf]
        %v165 = vld [vmem:[%s155 + $0x4] sm:$0xf]
        %v166 = vld [vmem:[%s155 + $0x8] sm:$0x1]
        %v167 = vld [vmem:[%s155 + $0xc] sm:$0xf]
        %v168 = vld [vmem:[%s155 + $0x10] sm:$0xf]
        %v169 = vld [vmem:[%s155 + $0x14] sm:$0x1]
        %v170 = vld [vmem:[%s155 + $0x18] sm:$0xf]
        %v171 = vld [vmem:[%s155 + $0x1c] sm:$0xf]
        %v172 = vld [vmem:[%s155 + $0x20] sm:$0x1]
        %v173 = vld [vmem:[%s155 + $0x24] sm:$0xf]
        %v174 = vld [vmem:[%s155 + $0x28] sm:$0xf]
        %v175 = vld [vmem:[%s155 + $0x2c] sm:$0x1]
        %v176 = vld [vmem:[%s155 + $0x30] sm:$0xf]
        %v177 = vld [vmem:[%s155 + $0x34] sm:$0xf]
        %v178 = vld [vmem:[%s155 + $0x38] sm:$0x1]
        %v179 = vld [vmem:[%s155 + $0x3c] sm:$0xf]
        %v180 = vld [vmem:[%s155 + $0x40] sm:$0xf]
        %v181 = vld [vmem:[%s155 + $0x44] sm:$0x1]
        %v182 = vld [vmem:[%s155 + $0x48] sm:$0xf]
        %v183 = vld [vmem:[%s155 + $0x4c] sm:$0xf]
        %v184 = vld [vmem:[%s155 + $0x50] sm:$0x1]
        %v185 = vld [vmem:[%s155 + $0x54] sm:$0xf]
        %v186 = vld [vmem:[%s155 + $0x58] sm:$0xf]
        %v187 = vld [vmem:[%s155 + $0x5c] sm:$0x1]
        %v188 = vld [vmem:[%s155 + $0x60] sm:$0xf]
        %v189 = vld [vmem:[%s155 + $0x64] sm:$0xf]
        %v190 = vld [vmem:[%s155 + $0x68] sm:$0x1]
        %v191 = vld [vmem:[%s155 + $0x6c] sm:$0xf]
        %v192 = vld [vmem:[%s155 + $0x70] sm:$0xf]
        %v193 = vld [vmem:[%s155 + $0x74] sm:$0x1]
        %v194 = vld [vmem:[%s155 + $0x78] sm:$0xf]
        %v195 = vld [vmem:[%s155 + $0x7c] sm:$0xf]
        %v196 = vld [vmem:[%s155 + $0x80] sm:$0x1]
        %v197 = vld [vmem:[%s155 + $0x84] sm:$0xf]
        %v198 = vld [vmem:[%s155 + $0x88] sm:$0xf]
        %v199 = vld [vmem:[%s155 + $0x8c] sm:$0x1]
        %v200 = vld [vmem:[%s155 + $0x90] sm:$0xf]
        %v201 = vld [vmem:[%s155 + $0x94] sm:$0xf]
        %v202 = vld [vmem:[%s155 + $0x98] sm:$0x1]
        %v203 = vld [vmem:[%s155 + $0x9c] sm:$0xf]
        %v204 = vld [vmem:[%s155 + $0xa0] sm:$0xf]
        %v205 = vld [vmem:[%s155 + $0xa4] sm:$0x1]
        %v206 = vld [vmem:[%s155 + $0xa8] sm:$0xf]
        %v207 = vld [vmem:[%s155 + $0xac] sm:$0xf]
        %v208 = vld [vmem:[%s155 + $0xb0] sm:$0x1]
        %v209 = vld [vmem:[%s155 + $0xb4] sm:$0xf]
        %v210 = vld [vmem:[%s155 + $0xb8] sm:$0xf]
        %v211 = vld [vmem:[%s155 + $0xbc] sm:$0x1]
        %v212 = vld [vmem:[%s155 + $0xc0] sm:$0xf]
        %v213 = vld [vmem:[%s155 + $0xc4] sm:$0xf]
        %v214 = vld [vmem:[%s155 + $0xc8] sm:$0x1]
        %v215 = vld [vmem:[%s155 + $0xcc] sm:$0xf]
        %v216 = vld [vmem:[%s155 + $0xd0] sm:$0xf]
        %v217 = vld [vmem:[%s155 + $0xd4] sm:$0x1]
        %v218 = vld [vmem:[%s1] sm:$0xf]
        %v219 = vld [vmem:[%s1 + $0x4] sm:$0xf]
        %v220 = vld [vmem:[%s1 + $0x8] sm:$0xf]
        %v221 = vld [vmem:[%s1 + $0xc] sm:$0xf]
        %v222 = vld [vmem:[%s1 + $0x10] sm:$0x3]
        %vm223 = vsmask.f32 3328
        %vm224 = vsmask.f32 7440
        %vm225 = vmor %vm223, %vm224
        %v227 = vshrl.u32 %v164, 16
        %v229 = vrot.slane %v227, 4
        %v230 = vshll.u32 %v164, 16
        %v232 = vrot.slane %v230, 5
        %v233 = vor.u32 %v229, %v232
        %v234 = vrot.slane %v233, 4
        %v236 = vshll.u32 %v165, 16
        %v238 = vrot.slane %v236, 5
        %v239 = vsel %vm225, %v234, %v238
        %v240 = vshrl.u32 %v165, 16
        %v242 = vrot.slane %v240, 4
        %v243 = vor.u32 %v242, %v238
        %v244 = vrot.slane %v243, 4
        %v246 = vshll.u32 %v166, 16
        %v248 = vrot.slane %v246, 5
        %v249 = vsel %vm225, %v244, %v248
        %v251 = vshrl.u32 %v167, 16
        %v253 = vrot.slane %v251, 4
        %v254 = vshll.u32 %v167, 16
        %v256 = vrot.slane %v254, 5
        %v257 = vor.u32 %v253, %v256
        %v258 = vrot.slane %v257, 4
        %v260 = vshll.u32 %v168, 16
        %v262 = vrot.slane %v260, 5
        %v263 = vsel %vm225, %v258, %v262
        %v264 = vshrl.u32 %v168, 16
        %v266 = vrot.slane %v264, 4
        %v267 = vor.u32 %v266, %v262
        %v268 = vrot.slane %v267, 4
        %v270 = vshll.u32 %v169, 16
        %v272 = vrot.slane %v270, 5
        %v273 = vsel %vm225, %v268, %v272
        %v275 = vshrl.u32 %v170, 16
        %v277 = vrot.slane %v275, 4
        %v278 = vshll.u32 %v170, 16
        %v280 = vrot.slane %v278, 5
        %v281 = vor.u32 %v277, %v280
        %v282 = vrot.slane %v281, 4
        %v284 = vshll.u32 %v171, 16
        %v286 = vrot.slane %v284, 5
        %v287 = vsel %vm225, %v282, %v286
        %v288 = vshrl.u32 %v171, 16
        %v290 = vrot.slane %v288, 4
        %v291 = vor.u32 %v290, %v286
        %v292 = vrot.slane %v291, 4
        %v294 = vshll.u32 %v172, 16
        %v296 = vrot.slane %v294, 5
        %v297 = vsel %vm225, %v292, %v296
        %v299 = vshrl.u32 %v173, 16
        %v301 = vrot.slane %v299, 4
        %v302 = vshll.u32 %v173, 16
        %v304 = vrot.slane %v302, 5
        %v305 = vor.u32 %v301, %v304
        %v306 = vrot.slane %v305, 4
        %v308 = vshll.u32 %v174, 16
        %v310 = vrot.slane %v308, 5
        %v311 = vsel %vm225, %v306, %v310
        %v312 = vshrl.u32 %v174, 16
        %v314 = vrot.slane %v312, 4
        %v315 = vor.u32 %v314, %v310
        %v316 = vrot.slane %v315, 4
        %v318 = vshll.u32 %v175, 16
        %v320 = vrot.slane %v318, 5
        %v321 = vsel %vm225, %v316, %v320
        %v323 = vshrl.u32 %v176, 16
        %v325 = vrot.slane %v323, 4
        %v326 = vshll.u32 %v176, 16
        %v328 = vrot.slane %v326, 5
        %v329 = vor.u32 %v325, %v328
        %v330 = vrot.slane %v329, 4
        %v332 = vshll.u32 %v177, 16
        %v334 = vrot.slane %v332, 5
        %v335 = vsel %vm225, %v330, %v334
        %v336 = vshrl.u32 %v177, 16
        %v338 = vrot.slane %v336, 4
        %v339 = vor.u32 %v338, %v334
        %v340 = vrot.slane %v339, 4
        %v342 = vshll.u32 %v178, 16
        %v344 = vrot.slane %v342, 5
        %v345 = vsel %vm225, %v340, %v344
        %v347 = vshrl.u32 %v179, 16
        %v349 = vrot.slane %v347, 4
        %v350 = vshll.u32 %v179, 16
        %v352 = vrot.slane %v350, 5
        %v353 = vor.u32 %v349, %v352
        %v354 = vrot.slane %v353, 4
        %v356 = vshll.u32 %v180, 16
        %v358 = vrot.slane %v356, 5
        %v359 = vsel %vm225, %v354, %v358
        %v360 = vshrl.u32 %v180, 16
        %v362 = vrot.slane %v360, 4
        %v363 = vor.u32 %v362, %v358
        %v364 = vrot.slane %v363, 4
        %v366 = vshll.u32 %v181, 16
        %v368 = vrot.slane %v366, 5
        %v369 = vsel %vm225, %v364, %v368
        %v371 = vshrl.u32 %v182, 16
        %v373 = vrot.slane %v371, 4
        %v374 = vshll.u32 %v182, 16
        %v376 = vrot.slane %v374, 5
        %v377 = vor.u32 %v373, %v376
        %v378 = vrot.slane %v377, 4
        %v380 = vshll.u32 %v183, 16
        %v382 = vrot.slane %v380, 5
        %v383 = vsel %vm225, %v378, %v382
        %v384 = vshrl.u32 %v183, 16
        %v386 = vrot.slane %v384, 4
        %v387 = vor.u32 %v386, %v382
        %v388 = vrot.slane %v387, 4
        %v390 = vshll.u32 %v184, 16
        %v392 = vrot.slane %v390, 5
        %v393 = vsel %vm225, %v388, %v392
        %v395 = vshrl.u32 %v185, 16
        %v397 = vrot.slane %v395, 4
        %v398 = vshll.u32 %v185, 16
        %v400 = vrot.slane %v398, 5
        %v401 = vor.u32 %v397, %v400
        %v402 = vrot.slane %v401, 4
        %v404 = vshll.u32 %v186, 16
        %v406 = vrot.slane %v404, 5
        %v407 = vsel %vm225, %v402, %v406
        %v408 = vshrl.u32 %v186, 16
        %v410 = vrot.slane %v408, 4
        %v411 = vor.u32 %v410, %v406
        %v412 = vrot.slane %v411, 4
        %v414 = vshll.u32 %v187, 16
        %v416 = vrot.slane %v414, 5
        %v417 = vsel %vm225, %v412, %v416
        %v419 = vshrl.u32 %v188, 16
        %v421 = vrot.slane %v419, 4
        %v422 = vshll.u32 %v188, 16
        %v424 = vrot.slane %v422, 5
        %v425 = vor.u32 %v421, %v424
        %v426 = vrot.slane %v425, 4
        %v428 = vshll.u32 %v189, 16
        %v430 = vrot.slane %v428, 5
        %v431 = vsel %vm225, %v426, %v430
        %v432 = vshrl.u32 %v189, 16
        %v434 = vrot.slane %v432, 4
        %v435 = vor.u32 %v434, %v430
        %v436 = vrot.slane %v435, 4
        %v438 = vshll.u32 %v190, 16
        %v440 = vrot.slane %v438, 5
        %v441 = vsel %vm225, %v436, %v440
        %v443 = vshrl.u32 %v191, 16
        %v445 = vrot.slane %v443, 4
        %v446 = vshll.u32 %v191, 16
        %v448 = vrot.slane %v446, 5
        %v449 = vor.u32 %v445, %v448
        %v450 = vrot.slane %v449, 4
        %v452 = vshll.u32 %v192, 16
        %v454 = vrot.slane %v452, 5
        %v455 = vsel %vm225, %v450, %v454
        %v456 = vshrl.u32 %v192, 16
        %v458 = vrot.slane %v456, 4
        %v459 = vor.u32 %v458, %v454
        %v460 = vrot.slane %v459, 4
        %v462 = vshll.u32 %v193, 16
        %v464 = vrot.slane %v462, 5
        %v465 = vsel %vm225, %v460, %v464
        %v467 = vshrl.u32 %v194, 16
        %v469 = vrot.slane %v467, 4
        %v470 = vshll.u32 %v194, 16
        %v472 = vrot.slane %v470, 5
        %v473 = vor.u32 %v469, %v472
        %v474 = vrot.slane %v473, 4
        %v476 = vshll.u32 %v195, 16
        %v478 = vrot.slane %v476, 5
        %v479 = vsel %vm225, %v474, %v478
        %v480 = vshrl.u32 %v195, 16
        %v482 = vrot.slane %v480, 4
        %v483 = vor.u32 %v482, %v478
        %v484 = vrot.slane %v483, 4
        %v486 = vshll.u32 %v196, 16
        %v488 = vrot.slane %v486, 5
        %v489 = vsel %vm225, %v484, %v488
        %v491 = vshrl.u32 %v197, 16
        %v493 = vrot.slane %v491, 4
        %v494 = vshll.u32 %v197, 16
        %v496 = vrot.slane %v494, 5
        %v497 = vor.u32 %v493, %v496
        %v498 = vrot.slane %v497, 4
        %v500 = vshll.u32 %v198, 16
        %v502 = vrot.slane %v500, 5
        %v503 = vsel %vm225, %v498, %v502
        %v504 = vshrl.u32 %v198, 16
        %v506 = vrot.slane %v504, 4
        %v507 = vor.u32 %v506, %v502
        %v508 = vrot.slane %v507, 4
        %v510 = vshll.u32 %v199, 16
        %v512 = vrot.slane %v510, 5
        %v513 = vsel %vm225, %v508, %v512
        %v515 = vshrl.u32 %v200, 16
        %v517 = vrot.slane %v515, 4
        %v518 = vshll.u32 %v200, 16
        %v520 = vrot.slane %v518, 5
        %v521 = vor.u32 %v517, %v520
        %v522 = vrot.slane %v521, 4
        %v524 = vshll.u32 %v201, 16
        %v526 = vrot.slane %v524, 5
        %v527 = vsel %vm225, %v522, %v526
        %v528 = vshrl.u32 %v201, 16
        %v530 = vrot.slane %v528, 4
        %v531 = vor.u32 %v530, %v526
        %v532 = vrot.slane %v531, 4
        %v534 = vshll.u32 %v202, 16
        %v536 = vrot.slane %v534, 5
        %v537 = vsel %vm225, %v532, %v536
        %v539 = vshrl.u32 %v203, 16
        %v541 = vrot.slane %v539, 4
        %v542 = vshll.u32 %v203, 16
        %v544 = vrot.slane %v542, 5
        %v545 = vor.u32 %v541, %v544
        %v546 = vrot.slane %v545, 4
        %v548 = vshll.u32 %v204, 16
        %v550 = vrot.slane %v548, 5
        %v551 = vsel %vm225, %v546, %v550
        %v552 = vshrl.u32 %v204, 16
        %v554 = vrot.slane %v552, 4
        %v555 = vor.u32 %v554, %v550
        %v556 = vrot.slane %v555, 4
        %v558 = vshll.u32 %v205, 16
        %v560 = vrot.slane %v558, 5
        %v561 = vsel %vm225, %v556, %v560
        %v563 = vshrl.u32 %v206, 16
        %v565 = vrot.slane %v563, 4
        %v566 = vshll.u32 %v206, 16
        %v568 = vrot.slane %v566, 5
        %v569 = vor.u32 %v565, %v568
        %v570 = vrot.slane %v569, 4
        %v572 = vshll.u32 %v207, 16
        %v574 = vrot.slane %v572, 5
        %v575 = vsel %vm225, %v570, %v574
        %v576 = vshrl.u32 %v207, 16
        %v578 = vrot.slane %v576, 4
        %v579 = vor.u32 %v578, %v574
        %v580 = vrot.slane %v579, 4
        %v582 = vshll.u32 %v208, 16
        %v584 = vrot.slane %v582, 5
        %v585 = vsel %vm225, %v580, %v584
        %v587 = vshrl.u32 %v209, 16
        %v589 = vrot.slane %v587, 4
        %v590 = vshll.u32 %v209, 16
        %v592 = vrot.slane %v590, 5
        %v593 = vor.u32 %v589, %v592
        %v594 = vrot.slane %v593, 4
        %v596 = vshll.u32 %v210, 16
        %v598 = vrot.slane %v596, 5
        %v599 = vsel %vm225, %v594, %v598
        %v600 = vshrl.u32 %v210, 16
        %v602 = vrot.slane %v600, 4
        %v603 = vor.u32 %v602, %v598
        %v604 = vrot.slane %v603, 4
        %v606 = vshll.u32 %v211, 16
        %v608 = vrot.slane %v606, 5
        %v609 = vsel %vm225, %v604, %v608
        %v610 = vunpack.c.l.b16 %v239
        %v611 = vunpack.c.l.b16 %v249
        %v612 = vunpack.c.l.b16 %v263
        %v613 = vunpack.c.l.b16 %v273
        %v614 = vunpack.c.l.b16 %v287
        %v615 = vunpack.c.l.b16 %v297
        %v616 = vunpack.c.l.b16 %v311
        %v617 = vunpack.c.l.b16 %v321
        %v618 = vunpack.c.l.b16 %v335
        %v619 = vunpack.c.l.b16 %v345
        %v620 = vunpack.c.l.b16 %v359
        %v621 = vunpack.c.l.b16 %v369
        %v622 = vunpack.c.l.b16 %v383
        %v623 = vunpack.c.l.b16 %v393
        %v624 = vunpack.c.l.b16 %v407
        %v625 = vunpack.c.l.b16 %v417
        %v626 = vunpack.c.l.b16 %v431
        %v627 = vunpack.c.l.b16 %v441
        %v628 = vunpack.c.l.b16 %v455
        %v629 = vunpack.c.l.b16 %v465
        %v630 = vunpack.c.l.b16 %v479
        %v631 = vunpack.c.l.b16 %v489
        %v632 = vunpack.c.l.b16 %v503
        %v633 = vunpack.c.l.b16 %v513
        %v634 = vunpack.c.l.b16 %v527
        %v635 = vunpack.c.l.b16 %v537
        %v636 = vunpack.c.l.b16 %v551
        %v637 = vunpack.c.l.b16 %v561
        %v638 = vunpack.c.l.b16 %v575
        %v639 = vunpack.c.l.b16 %v585
        %v640 = vunpack.c.l.b16 %v599
        %v641 = vunpack.c.l.b16 %v609
        %v642 = vpack.c.b16 %v611, %v610
        %v643 = vpack.c.b16 %v613, %v612
        %v644 = vpack.c.b16 %v615, %v614
        %v645 = vpack.c.b16 %v617, %v616
        %v646 = vpack.c.b16 %v619, %v618
        %v647 = vpack.c.b16 %v621, %v620
        %v648 = vpack.c.b16 %v623, %v622
        %v649 = vpack.c.b16 %v625, %v624
        %v650 = vpack.c.b16 %v627, %v626
        %v651 = vpack.c.b16 %v629, %v628
        %v652 = vpack.c.b16 %v631, %v630
        %v653 = vpack.c.b16 %v633, %v632
        %v654 = vpack.c.b16 %v635, %v634
        %v655 = vpack.c.b16 %v637, %v636
        %v656 = vpack.c.b16 %v639, %v638
        %v657 = vpack.c.b16 %v641, %v640
        %v659 = vunpack.c.l.b16 %v218
        %v660 = vpack.c.b16 %v659, %v659
        %v661 = vrot.slane %v660, 2
        %vm662 = vcmask 31744
        %v664 = vsel %vm662, %v642, 0
        %v667 = vsel %vm662, %v643, 0
        %v670 = vsel %vm662, %v644, 0
        %v673 = vsel %vm662, %v645, 0
        %v676 = vsel %vm662, %v646, 0
        %v679 = vsel %vm662, %v647, 0
        %v682 = vsel %vm662, %v648, 0
        %v685 = vsel %vm662, %v649, 0
        %v688 = vsel %vm662, %v650, 0
        %v691 = vsel %vm662, %v651, 0
        %v694 = vsel %vm662, %v652, 0
        %v697 = vsel %vm662, %v653, 0
        %v700 = vsel %vm662, %v654, 0
        %v703 = vsel %vm662, %v655, 0
        %v706 = vsel %vm662, %v656, 0
        %v709 = vsel %vm662, %v657, 0
        %vm711 = vcmask 1041408
        %v713 = vsel %vm711, %v661, 0
        %715 = vmatprep.subr.bf16.mxu0 0
        %716 = vmatpush1.bf16.msra.mxu0 %v713
        %717 = vmatprep.subr.bf16.mxu0 0
        %718 = vmatpush1.bf16.msra.mxu0 0
        %719 = vmatprep.subr.bf16.mxu0 0
        %720 = vmatpush1.bf16.msra.mxu0 0
        %721 = vmatprep.subr.bf16.mxu0 0
        %722 = vmatpush1.bf16.msra.mxu0 0
        %723 = vmatprep.subr.bf16.mxu0 0
        %724 = vmatpush1.bf16.msra.mxu0 0
        %725 = vmatprep.subr.bf16.mxu0 0
        %726 = vmatpush1.bf16.msra.mxu0 0
        %727 = vmatprep.subr.bf16.mxu0 0
        %728 = vmatpush1.bf16.msra.mxu0 0
        %729 = vmatprep.subr.bf16.mxu0 0
        %730 = vmatpush1.bf16.msra.mxu0 0
        %731 = vmatprep.subr.bf16.mxu0 0
        %732 = vmatpush1.bf16.msra.mxu0 0
        %733 = vmatprep.subr.bf16.mxu0 0
        %734 = vmatpush1.bf16.msra.mxu0 0
        %735 = vmatprep.subr.bf16.mxu0 0
        %736 = vmatpush1.bf16.msra.mxu0 0
        %737 = vmatprep.subr.bf16.mxu0 0
        %738 = vmatpush1.bf16.msra.mxu0 0
        %739 = vmatprep.subr.bf16.mxu0 0
        %740 = vmatpush1.bf16.msra.mxu0 0
        %741 = vmatprep.subr.bf16.mxu0 0
        %742 = vmatpush1.bf16.msra.mxu0 0
        %743 = vmatprep.subr.bf16.mxu0 0
        %744 = vmatpush1.bf16.msra.mxu0 0
        %745 = vmatprep.subr.bf16.mxu0 0
        %746 = vmatpush1.bf16.msra.mxu0 0
        %747 = vmatprep.mubr.bf16.mxu0 0
        %748 = vmatmul.mubr.bf16.gmra.mrb[0].mxu0 %v664
        %v749 = vpop.f32.mrb[0].mxu0
        %v750 = vadd.f32 0.0, %v749
        %v751 = vpop.f32.mrb[0].mxu0
        %v752 = vpop.f32.mrb[0].mxu0
        %v753 = vadd.f32 0.0, %v752
        %v754 = vpop.f32.mrb[0].mxu0
        %755 = vmatprep.mubr.bf16.mxu0 0
        %756 = vmatmul.mubr.bf16.gmra.mrb[0].mxu0 %v667
        %v757 = vpop.f32.mrb[0].mxu0
        %v758 = vadd.f32 0.0, %v757
        %v759 = vpop.f32.mrb[0].mxu0
        %v760 = vpop.f32.mrb[0].mxu0
        %v761 = vadd.f32 0.0, %v760
        %v762 = vpop.f32.mrb[0].mxu0
        %763 = vmatprep.mubr.bf16.mxu0 0
        %764 = vmatmul.mubr.bf16.gmra.mrb[0].mxu0 %v670
        %v765 = vpop.f32.mrb[0].mxu0
        %v766 = vadd.f32 0.0, %v765
        %v767 = vpop.f32.mrb[0].mxu0
        %v768 = vpop.f32.mrb[0].mxu0
        %v769 = vadd.f32 0.0, %v768
        %v770 = vpop.f32.mrb[0].mxu0
        %771 = vmatprep.mubr.bf16.mxu0 0
        %772 = vmatmul.mubr.bf16.gmra.mrb[0].mxu0 %v673
        %v773 = vpop.f32.mrb[0].mxu0
        %v774 = vadd.f32 0.0, %v773
        %v775 = vpop.f32.mrb[0].mxu0
        %v776 = vpop.f32.mrb[0].mxu0
        %v777 = vadd.f32 0.0, %v776
        %v778 = vpop.f32.mrb[0].mxu0
        %779 = vmatprep.mubr.bf16.mxu0 0
        %780 = vmatmul.mubr.bf16.gmra.mrb[0].mxu0 %v676
        %v781 = vpop.f32.mrb[0].mxu0
        %v782 = vadd.f32 0.0, %v781
        %v783 = vpop.f32.mrb[0].mxu0
        %v784 = vpop.f32.mrb[0].mxu0
        %v785 = vadd.f32 0.0, %v784
        %v786 = vpop.f32.mrb[0].mxu0
        %787 = vmatprep.mubr.bf16.mxu0 0
        %788 = vmatmul.mubr.bf16.gmra.mrb[0].mxu0 %v679
        %v789 = vpop.f32.mrb[0].mxu0
        %v790 = vadd.f32 0.0, %v789
        %v791 = vpop.f32.mrb[0].mxu0
        %v792 = vpop.f32.mrb[0].mxu0
        %v793 = vadd.f32 0.0, %v792
        %v794 = vpop.f32.mrb[0].mxu0
        %795 = vmatprep.mubr.bf16.mxu0 0
        %796 = vmatmul.mubr.bf16.gmra.mrb[0].mxu0 %v682
        %v797 = vpop.f32.mrb[0].mxu0
        %v798 = vadd.f32 0.0, %v797
        %v799 = vpop.f32.mrb[0].mxu0
        %v800 = vpop.f32.mrb[0].mxu0
        %v801 = vadd.f32 0.0, %v800
        %v802 = vpop.f32.mrb[0].mxu0
        %803 = vmatprep.mubr.bf16.mxu0 0
        %804 = vmatmul.mubr.bf16.gmra.mrb[0].mxu0 %v685
        %v805 = vpop.f32.mrb[0].mxu0
        %v806 = vadd.f32 0.0, %v805
        %v807 = vpop.f32.mrb[0].mxu0
        %v808 = vpop.f32.mrb[0].mxu0
        %v809 = vadd.f32 0.0, %v808
        %v810 = vpop.f32.mrb[0].mxu0
        %811 = vmatprep.mubr.bf16.mxu0 0
        %812 = vmatmul.mubr.bf16.gmra.mrb[0].mxu0 %v688
        %v813 = vpop.f32.mrb[0].mxu0
        %v814 = vadd.f32 0.0, %v813
        %v815 = vpop.f32.mrb[0].mxu0
        %v816 = vpop.f32.mrb[0].mxu0
        %v817 = vadd.f32 0.0, %v816
        %v818 = vpop.f32.mrb[0].mxu0
        %819 = vmatprep.mubr.bf16.mxu0 0
        %820 = vmatmul.mubr.bf16.gmra.mrb[0].mxu0 %v691
        %v821 = vpop.f32.mrb[0].mxu0
        %v822 = vadd.f32 0.0, %v821
        %v823 = vpop.f32.mrb[0].mxu0
        %v824 = vpop.f32.mrb[0].mxu0
        %v825 = vadd.f32 0.0, %v824
        %v826 = vpop.f32.mrb[0].mxu0
        %827 = vmatprep.mubr.bf16.mxu0 0
        %828 = vmatmul.mubr.bf16.gmra.mrb[0].mxu0 %v694
        %v829 = vpop.f32.mrb[0].mxu0
        %v830 = vadd.f32 0.0, %v829
        %v831 = vpop.f32.mrb[0].mxu0
        %v832 = vpop.f32.mrb[0].mxu0
        %v833 = vadd.f32 0.0, %v832
        %v834 = vpop.f32.mrb[0].mxu0
        %835 = vmatprep.mubr.bf16.mxu0 0
        %836 = vmatmul.mubr.bf16.gmra.mrb[0].mxu0 %v697
        %v837 = vpop.f32.mrb[0].mxu0
        %v838 = vadd.f32 0.0, %v837
        %v839 = vpop.f32.mrb[0].mxu0
        %v840 = vpop.f32.mrb[0].mxu0
        %v841 = vadd.f32 0.0, %v840
        %v842 = vpop.f32.mrb[0].mxu0
        %843 = vmatprep.mubr.bf16.mxu0 0
        %844 = vmatmul.mubr.bf16.gmra.mrb[0].mxu0 %v700
        %v845 = vpop.f32.mrb[0].mxu0
        %v846 = vadd.f32 0.0, %v845
        %v847 = vpop.f32.mrb[0].mxu0
        %v848 = vpop.f32.mrb[0].mxu0
        %v849 = vadd.f32 0.0, %v848
        %v850 = vpop.f32.mrb[0].mxu0
        %851 = vmatprep.mubr.bf16.mxu0 0
        %852 = vmatmul.mubr.bf16.gmra.mrb[0].mxu0 %v703
        %v853 = vpop.f32.mrb[0].mxu0
        %v854 = vadd.f32 0.0, %v853
        %v855 = vpop.f32.mrb[0].mxu0
        %v856 = vpop.f32.mrb[0].mxu0
        %v857 = vadd.f32 0.0, %v856
        %v858 = vpop.f32.mrb[0].mxu0
        %859 = vmatprep.mubr.bf16.mxu0 0
        %860 = vmatmul.mubr.bf16.gmra.mrb[0].mxu0 %v706
        %v861 = vpop.f32.mrb[0].mxu0
        %v862 = vadd.f32 0.0, %v861
        %v863 = vpop.f32.mrb[0].mxu0
        %v864 = vpop.f32.mrb[0].mxu0
        %v865 = vadd.f32 0.0, %v864
        %v866 = vpop.f32.mrb[0].mxu0
        %867 = vmatprep.mubr.bf16.mxu0 0
        %868 = vmatmul.mubr.bf16.gmra.mrb[0].mxu0 %v709
        %v869 = vpop.f32.mrb[0].mxu0
        %v870 = vadd.f32 0.0, %v869
        %v871 = vpop.f32.mrb[0].mxu0
        %v872 = vpop.f32.mrb[0].mxu0
        %v873 = vadd.f32 0.0, %v872
        %v874 = vpop.f32.mrb[0].mxu0
        %875 = vdwg.mxu0
        %v908 = vunpack.c.l.b16 %v164
        %v909 = vunpack.c.l.b16 %v165
        %v910 = vunpack.c.l.b16 %v167
        %v911 = vunpack.c.l.b16 %v168
        %v912 = vunpack.c.l.b16 %v170
        %v913 = vunpack.c.l.b16 %v171
        %v914 = vunpack.c.l.b16 %v173
        %v915 = vunpack.c.l.b16 %v174
        %v916 = vunpack.c.l.b16 %v176
        %v917 = vunpack.c.l.b16 %v177
        %v918 = vunpack.c.l.b16 %v179
        %v919 = vunpack.c.l.b16 %v180
        %v920 = vunpack.c.l.b16 %v182
        %v921 = vunpack.c.l.b16 %v183
        %v922 = vunpack.c.l.b16 %v185
        %v923 = vunpack.c.l.b16 %v186
        %v924 = vunpack.c.l.b16 %v188
        %v925 = vunpack.c.l.b16 %v189
        %v926 = vunpack.c.l.b16 %v191
        %v927 = vunpack.c.l.b16 %v192
        %v928 = vunpack.c.l.b16 %v194
        %v929 = vunpack.c.l.b16 %v195
        %v930 = vunpack.c.l.b16 %v197
        %v931 = vunpack.c.l.b16 %v198
        %v932 = vunpack.c.l.b16 %v200
        %v933 = vunpack.c.l.b16 %v201
        %v934 = vunpack.c.l.b16 %v203
        %v935 = vunpack.c.l.b16 %v204
        %v936 = vunpack.c.l.b16 %v206
        %v937 = vunpack.c.l.b16 %v207
        %v938 = vunpack.c.l.b16 %v209
        %v939 = vunpack.c.l.b16 %v210
        %v940 = vpack.c.b16 %v909, %v908
        %v941 = vpack.c.b16 %v911, %v910
        %v942 = vpack.c.b16 %v913, %v912
        %v943 = vpack.c.b16 %v915, %v914
        %v944 = vpack.c.b16 %v917, %v916
        %v945 = vpack.c.b16 %v919, %v918
        %v946 = vpack.c.b16 %v921, %v920
        %v947 = vpack.c.b16 %v923, %v922
        %v948 = vpack.c.b16 %v925, %v924
        %v949 = vpack.c.b16 %v927, %v926
        %v950 = vpack.c.b16 %v929, %v928
        %v951 = vpack.c.b16 %v931, %v930
        %v952 = vpack.c.b16 %v933, %v932
        %v953 = vpack.c.b16 %v935, %v934
        %v954 = vpack.c.b16 %v937, %v936
        %v955 = vpack.c.b16 %v939, %v938
        %v957 = vsel %vm662, %v940, 0
        %v960 = vsel %vm662, %v941, 0
        %v963 = vsel %vm662, %v942, 0
        %v966 = vsel %vm662, %v943, 0
        %v969 = vsel %vm662, %v944, 0
        %v972 = vsel %vm662, %v945, 0
        %v975 = vsel %vm662, %v946, 0
        %v978 = vsel %vm662, %v947, 0
        %v981 = vsel %vm662, %v948, 0
        %v984 = vsel %vm662, %v949, 0
        %v987 = vsel %vm662, %v950, 0
        %v990 = vsel %vm662, %v951, 0
        %v993 = vsel %vm662, %v952, 0
        %v996 = vsel %vm662, %v953, 0
        %v999 = vsel %vm662, %v954, 0
        %v1002 = vsel %vm662, %v955, 0
        %v1005 = vsel %vm711, %v218, 0
        %1007 = vmatprep.subr.bf16.mxu0 0
        %1008 = vmatpush1.bf16.msra.mxu0 %v1005
        %1009 = vmatprep.subr.bf16.mxu0 0
        %1010 = vmatpush1.bf16.msra.mxu0 0
        %1011 = vmatprep.subr.bf16.mxu0 0
        %1012 = vmatpush1.bf16.msra.mxu0 0
        %1013 = vmatprep.subr.bf16.mxu0 0
        %1014 = vmatpush1.bf16.msra.mxu0 0
        %1015 = vmatprep.subr.bf16.mxu0 0
        %1016 = vmatpush1.bf16.msra.mxu0 0
        %1017 = vmatprep.subr.bf16.mxu0 0
        %1018 = vmatpush1.bf16.msra.mxu0 0
        %1019 = vmatprep.subr.bf16.mxu0 0
        %1020 = vmatpush1.bf16.msra.mxu0 0
        %1021 = vmatprep.subr.bf16.mxu0 0
        %1022 = vmatpush1.bf16.msra.mxu0 0
        %1023 = vmatprep.subr.bf16.mxu0 0
        %1024 = vmatpush1.bf16.msra.mxu0 0
        %1025 = vmatprep.subr.bf16.mxu0 0
        %1026 = vmatpush1.bf16.msra.mxu0 0
        %1027 = vmatprep.subr.bf16.mxu0 0
        %1028 = vmatpush1.bf16.msra.mxu0 0
        %1029 = vmatprep.subr.bf16.mxu0 0
        %1030 = vmatpush1.bf16.msra.mxu0 0
        %1031 = vmatprep.subr.bf16.mxu0 0
        %1032 = vmatpush1.bf16.msra.mxu0 0
        %1033 = vmatprep.subr.bf16.mxu0 0
        %1034 = vmatpush1.bf16.msra.mxu0 0
        %1035 = vmatprep.subr.bf16.mxu0 0
        %1036 = vmatpush1.bf16.msra.mxu0 0
        %1037 = vmatprep.subr.bf16.mxu0 0
        %1038 = vmatpush1.bf16.msra.mxu0 0
        %1039 = vmatprep.mubr.bf16.mxu0 0
        %1040 = vmatmul.mubr.bf16.gmra.mrb[0].mxu0 %v957
        %v1041 = vpop.f32.mrb[0].mxu0
        %v1042 = vadd.f32 %v750, %v1041
        %v1043 = vpop.f32.mrb[0].mxu0
        %v1044 = vpop.f32.mrb[0].mxu0
        %v1045 = vadd.f32 %v753, %v1044
        %v1046 = vpop.f32.mrb[0].mxu0
        %1047 = vmatprep.mubr.bf16.mxu0 0
        %1048 = vmatmul.mubr.bf16.gmra.mrb[0].mxu0 %v960
        %v1049 = vpop.f32.mrb[0].mxu0
        %v1050 = vadd.f32 %v758, %v1049
        %v1051 = vpop.f32.mrb[0].mxu0
        %v1052 = vpop.f32.mrb[0].mxu0
        %v1053 = vadd.f32 %v761, %v1052
        %v1054 = vpop.f32.mrb[0].mxu0
        %1055 = vmatprep.mubr.bf16.mxu0 0
        %1056 = vmatmul.mubr.bf16.gmra.mrb[0].mxu0 %v963
        %v1057 = vpop.f32.mrb[0].mxu0
        %v1058 = vadd.f32 %v766, %v1057
        %v1059 = vpop.f32.mrb[0].mxu0
        %v1060 = vpop.f32.mrb[0].mxu0
        %v1061 = vadd.f32 %v769, %v1060
        %v1062 = vpop.f32.mrb[0].mxu0
        %1063 = vmatprep.mubr.bf16.mxu0 0
        %1064 = vmatmul.mubr.bf16.gmra.mrb[0].mxu0 %v966
        %v1065 = vpop.f32.mrb[0].mxu0
        %v1066 = vadd.f32 %v774, %v1065
        %v1067 = vpop.f32.mrb[0].mxu0
        %v1068 = vpop.f32.mrb[0].mxu0
        %v1069 = vadd.f32 %v777, %v1068
        %v1070 = vpop.f32.mrb[0].mxu0
        %1071 = vmatprep.mubr.bf16.mxu0 0
        %1072 = vmatmul.mubr.bf16.gmra.mrb[0].mxu0 %v969
        %v1073 = vpop.f32.mrb[0].mxu0
        %v1074 = vadd.f32 %v782, %v1073
        %v1075 = vpop.f32.mrb[0].mxu0
        %v1076 = vpop.f32.mrb[0].mxu0
        %v1077 = vadd.f32 %v785, %v1076
        %v1078 = vpop.f32.mrb[0].mxu0
        %1079 = vmatprep.mubr.bf16.mxu0 0
        %1080 = vmatmul.mubr.bf16.gmra.mrb[0].mxu0 %v972
        %v1081 = vpop.f32.mrb[0].mxu0
        %v1082 = vadd.f32 %v790, %v1081
        %v1083 = vpop.f32.mrb[0].mxu0
        %v1084 = vpop.f32.mrb[0].mxu0
        %v1085 = vadd.f32 %v793, %v1084
        %v1086 = vpop.f32.mrb[0].mxu0
        %1087 = vmatprep.mubr.bf16.mxu0 0
        %1088 = vmatmul.mubr.bf16.gmra.mrb[0].mxu0 %v975
        %v1089 = vpop.f32.mrb[0].mxu0
        %v1090 = vadd.f32 %v798, %v1089
        %v1091 = vpop.f32.mrb[0].mxu0
        %v1092 = vpop.f32.mrb[0].mxu0
        %v1093 = vadd.f32 %v801, %v1092
        %v1094 = vpop.f32.mrb[0].mxu0
        %1095 = vmatprep.mubr.bf16.mxu0 0
        %1096 = vmatmul.mubr.bf16.gmra.mrb[0].mxu0 %v978
        %v1097 = vpop.f32.mrb[0].mxu0
        %v1098 = vadd.f32 %v806, %v1097
        %v1099 = vpop.f32.mrb[0].mxu0
        %v1100 = vpop.f32.mrb[0].mxu0
        %v1101 = vadd.f32 %v809, %v1100
        %v1102 = vpop.f32.mrb[0].mxu0
        %1103 = vmatprep.mubr.bf16.mxu0 0
        %1104 = vmatmul.mubr.bf16.gmra.mrb[0].mxu0 %v981
        %v1105 = vpop.f32.mrb[0].mxu0
        %v1106 = vadd.f32 %v814, %v1105
        %v1107 = vpop.f32.mrb[0].mxu0
        %v1108 = vpop.f32.mrb[0].mxu0
        %v1109 = vadd.f32 %v817, %v1108
        %v1110 = vpop.f32.mrb[0].mxu0
        %1111 = vmatprep.mubr.bf16.mxu0 0
        %1112 = vmatmul.mubr.bf16.gmra.mrb[0].mxu0 %v984
        %v1113 = vpop.f32.mrb[0].mxu0
        %v1114 = vadd.f32 %v822, %v1113
        %v1115 = vpop.f32.mrb[0].mxu0
        %v1116 = vpop.f32.mrb[0].mxu0
        %v1117 = vadd.f32 %v825, %v1116
        %v1118 = vpop.f32.mrb[0].mxu0
        %1119 = vmatprep.mubr.bf16.mxu0 0
        %1120 = vmatmul.mubr.bf16.gmra.mrb[0].mxu0 %v987
        %v1121 = vpop.f32.mrb[0].mxu0
        %v1122 = vadd.f32 %v830, %v1121
        %v1123 = vpop.f32.mrb[0].mxu0
        %v1124 = vpop.f32.mrb[0].mxu0
        %v1125 = vadd.f32 %v833, %v1124
        %v1126 = vpop.f32.mrb[0].mxu0
        %1127 = vmatprep.mubr.bf16.mxu0 0
        %1128 = vmatmul.mubr.bf16.gmra.mrb[0].mxu0 %v990
        %v1129 = vpop.f32.mrb[0].mxu0
        %v1130 = vadd.f32 %v838, %v1129
        %v1131 = vpop.f32.mrb[0].mxu0
        %v1132 = vpop.f32.mrb[0].mxu0
        %v1133 = vadd.f32 %v841, %v1132
        %v1134 = vpop.f32.mrb[0].mxu0
        %1135 = vmatprep.mubr.bf16.mxu0 0
        %1136 = vmatmul.mubr.bf16.gmra.mrb[0].mxu0 %v993
        %v1137 = vpop.f32.mrb[0].mxu0
        %v1138 = vadd.f32 %v846, %v1137
        %v1139 = vpop.f32.mrb[0].mxu0
        %v1140 = vpop.f32.mrb[0].mxu0
        %v1141 = vadd.f32 %v849, %v1140
        %v1142 = vpop.f32.mrb[0].mxu0
        %1143 = vmatprep.mubr.bf16.mxu0 0
        %1144 = vmatmul.mubr.bf16.gmra.mrb[0].mxu0 %v996
        %v1145 = vpop.f32.mrb[0].mxu0
        %v1146 = vadd.f32 %v854, %v1145
        %v1147 = vpop.f32.mrb[0].mxu0
        %v1148 = vpop.f32.mrb[0].mxu0
        %v1149 = vadd.f32 %v857, %v1148
        %v1150 = vpop.f32.mrb[0].mxu0
        %1151 = vmatprep.mubr.bf16.mxu0 0
        %1152 = vmatmul.mubr.bf16.gmra.mrb[0].mxu0 %v999
        %v1153 = vpop.f32.mrb[0].mxu0
        %v1154 = vadd.f32 %v862, %v1153
        %v1155 = vpop.f32.mrb[0].mxu0
        %v1156 = vpop.f32.mrb[0].mxu0
        %v1157 = vadd.f32 %v865, %v1156
        %v1158 = vpop.f32.mrb[0].mxu0
        %1159 = vmatprep.mubr.bf16.mxu0 0
        %1160 = vmatmul.mubr.bf16.gmra.mrb[0].mxu0 %v1002
        %v1161 = vpop.f32.mrb[0].mxu0
        %v1162 = vadd.f32 %v870, %v1161
        %v1163 = vpop.f32.mrb[0].mxu0
        %v1164 = vpop.f32.mrb[0].mxu0
        %v1165 = vadd.f32 %v873, %v1164
        %v1166 = vpop.f32.mrb[0].mxu0
        %1167 = vdwg.mxu0
        %vm1184 = vcmask 1042432
        %vm1185 = vcmask 1046532
        %vm1186 = vmor %vm1184, %vm1185
        %v1187 = vrot.slane %v164, 5
        %v1188 = vrot.slane %v1187, 4
        %v1189 = vrot.slane %v165, 5
        %v1190 = vsel %vm1186, %v1188, %v1189
        %v1191 = vrot.slane %v1189, 4
        %v1192 = vrot.slane %v166, 5
        %v1193 = vsel %vm1186, %v1191, %v1192
        %v1194 = vrot.slane %v167, 5
        %v1195 = vrot.slane %v1194, 4
        %v1196 = vrot.slane %v168, 5
        %v1197 = vsel %vm1186, %v1195, %v1196
        %v1198 = vrot.slane %v1196, 4
        %v1199 = vrot.slane %v169, 5
        %v1200 = vsel %vm1186, %v1198, %v1199
        %v1201 = vrot.slane %v170, 5
        %v1202 = vrot.slane %v1201, 4
        %v1203 = vrot.slane %v171, 5
        %v1204 = vsel %vm1186, %v1202, %v1203
        %v1205 = vrot.slane %v1203, 4
        %v1206 = vrot.slane %v172, 5
        %v1207 = vsel %vm1186, %v1205, %v1206
        %v1208 = vrot.slane %v173, 5
        %v1209 = vrot.slane %v1208, 4
        %v1210 = vrot.slane %v174, 5
        %v1211 = vsel %vm1186, %v1209, %v1210
        %v1212 = vrot.slane %v1210, 4
        %v1213 = vrot.slane %v175, 5
        %v1214 = vsel %vm1186, %v1212, %v1213
        %v1215 = vrot.slane %v176, 5
        %v1216 = vrot.slane %v1215, 4
        %v1217 = vrot.slane %v177, 5
        %v1218 = vsel %vm1186, %v1216, %v1217
        %v1219 = vrot.slane %v1217, 4
        %v1220 = vrot.slane %v178, 5
        %v1221 = vsel %vm1186, %v1219, %v1220
        %v1222 = vrot.slane %v179, 5
        %v1223 = vrot.slane %v1222, 4
        %v1224 = vrot.slane %v180, 5
        %v1225 = vsel %vm1186, %v1223, %v1224
        %v1226 = vrot.slane %v1224, 4
        %v1227 = vrot.slane %v181, 5
        %v1228 = vsel %vm1186, %v1226, %v1227
        %v1229 = vrot.slane %v182, 5
        %v1230 = vrot.slane %v1229, 4
        %v1231 = vrot.slane %v183, 5
        %v1232 = vsel %vm1186, %v1230, %v1231
        %v1233 = vrot.slane %v1231, 4
        %v1234 = vrot.slane %v184, 5
        %v1235 = vsel %vm1186, %v1233, %v1234
        %v1236 = vrot.slane %v185, 5
        %v1237 = vrot.slane %v1236, 4
        %v1238 = vrot.slane %v186, 5
        %v1239 = vsel %vm1186, %v1237, %v1238
        %v1240 = vrot.slane %v1238, 4
        %v1241 = vrot.slane %v187, 5
        %v1242 = vsel %vm1186, %v1240, %v1241
        %v1243 = vrot.slane %v188, 5
        %v1244 = vrot.slane %v1243, 4
        %v1245 = vrot.slane %v189, 5
        %v1246 = vsel %vm1186, %v1244, %v1245
        %v1247 = vrot.slane %v1245, 4
        %v1248 = vrot.slane %v190, 5
        %v1249 = vsel %vm1186, %v1247, %v1248
        %v1250 = vrot.slane %v191, 5
        %v1251 = vrot.slane %v1250, 4
        %v1252 = vrot.slane %v192, 5
        %v1253 = vsel %vm1186, %v1251, %v1252
        %v1254 = vrot.slane %v1252, 4
        %v1255 = vrot.slane %v193, 5
        %v1256 = vsel %vm1186, %v1254, %v1255
        %v1257 = vrot.slane %v194, 5
        %v1258 = vrot.slane %v1257, 4
        %v1259 = vrot.slane %v195, 5
        %v1260 = vsel %vm1186, %v1258, %v1259
        %v1261 = vrot.slane %v1259, 4
        %v1262 = vrot.slane %v196, 5
        %v1263 = vsel %vm1186, %v1261, %v1262
        %v1264 = vrot.slane %v197, 5
        %v1265 = vrot.slane %v1264, 4
        %v1266 = vrot.slane %v198, 5
        %v1267 = vsel %vm1186, %v1265, %v1266
        %v1268 = vrot.slane %v1266, 4
        %v1269 = vrot.slane %v199, 5
        %v1270 = vsel %vm1186, %v1268, %v1269
        %v1271 = vrot.slane %v200, 5
        %v1272 = vrot.slane %v1271, 4
        %v1273 = vrot.slane %v201, 5
        %v1274 = vsel %vm1186, %v1272, %v1273
        %v1275 = vrot.slane %v1273, 4
        %v1276 = vrot.slane %v202, 5
        %v1277 = vsel %vm1186, %v1275, %v1276
        %v1278 = vrot.slane %v203, 5
        %v1279 = vrot.slane %v1278, 4
        %v1280 = vrot.slane %v204, 5
        %v1281 = vsel %vm1186, %v1279, %v1280
        %v1282 = vrot.slane %v1280, 4
        %v1283 = vrot.slane %v205, 5
        %v1284 = vsel %vm1186, %v1282, %v1283
        %v1285 = vrot.slane %v206, 5
        %v1286 = vrot.slane %v1285, 4
        %v1287 = vrot.slane %v207, 5
        %v1288 = vsel %vm1186, %v1286, %v1287
        %v1289 = vrot.slane %v1287, 4
        %v1290 = vrot.slane %v208, 5
        %v1291 = vsel %vm1186, %v1289, %v1290
        %v1292 = vrot.slane %v209, 5
        %v1293 = vrot.slane %v1292, 4
        %v1294 = vrot.slane %v210, 5
        %v1295 = vsel %vm1186, %v1293, %v1294
        %v1296 = vrot.slane %v1294, 4
        %v1297 = vrot.slane %v211, 5
        %v1298 = vsel %vm1186, %v1296, %v1297
        %v1299 = vunpack.c.l.b16 %v1190
        %v1300 = vunpack.c.l.b16 %v1193
        %v1301 = vunpack.c.l.b16 %v1197
        %v1302 = vunpack.c.l.b16 %v1200
        %v1303 = vunpack.c.l.b16 %v1204
        %v1304 = vunpack.c.l.b16 %v1207
        %v1305 = vunpack.c.l.b16 %v1211
        %v1306 = vunpack.c.l.b16 %v1214
        %v1307 = vunpack.c.l.b16 %v1218
        %v1308 = vunpack.c.l.b16 %v1221
        %v1309 = vunpack.c.l.b16 %v1225
        %v1310 = vunpack.c.l.b16 %v1228
        %v1311 = vunpack.c.l.b16 %v1232
        %v1312 = vunpack.c.l.b16 %v1235
        %v1313 = vunpack.c.l.b16 %v1239
        %v1314 = vunpack.c.l.b16 %v1242
        %v1315 = vunpack.c.l.b16 %v1246
        %v1316 = vunpack.c.l.b16 %v1249
        %v1317 = vunpack.c.l.b16 %v1253
        %v1318 = vunpack.c.l.b16 %v1256
        %v1319 = vunpack.c.l.b16 %v1260
        %v1320 = vunpack.c.l.b16 %v1263
        %v1321 = vunpack.c.l.b16 %v1267
        %v1322 = vunpack.c.l.b16 %v1270
        %v1323 = vunpack.c.l.b16 %v1274
        %v1324 = vunpack.c.l.b16 %v1277
        %v1325 = vunpack.c.l.b16 %v1281
        %v1326 = vunpack.c.l.b16 %v1284
        %v1327 = vunpack.c.l.b16 %v1288
        %v1328 = vunpack.c.l.b16 %v1291
        %v1329 = vunpack.c.l.b16 %v1295
        %v1330 = vunpack.c.l.b16 %v1298
        %v1331 = vpack.c.b16 %v1300, %v1299
        %v1332 = vpack.c.b16 %v1302, %v1301
        %v1333 = vpack.c.b16 %v1304, %v1303
        %v1334 = vpack.c.b16 %v1306, %v1305
        %v1335 = vpack.c.b16 %v1308, %v1307
        %v1336 = vpack.c.b16 %v1310, %v1309
        %v1337 = vpack.c.b16 %v1312, %v1311
        %v1338 = vpack.c.b16 %v1314, %v1313
        %v1339 = vpack.c.b16 %v1316, %v1315
        %v1340 = vpack.c.b16 %v1318, %v1317
        %v1341 = vpack.c.b16 %v1320, %v1319
        %v1342 = vpack.c.b16 %v1322, %v1321
        %v1343 = vpack.c.b16 %v1324, %v1323
        %v1344 = vpack.c.b16 %v1326, %v1325
        %v1345 = vpack.c.b16 %v1328, %v1327
        %v1346 = vpack.c.b16 %v1330, %v1329
        %v1348 = vsel %vm662, %v1331, 0
        %v1351 = vsel %vm662, %v1332, 0
        %v1354 = vsel %vm662, %v1333, 0
        %v1357 = vsel %vm662, %v1334, 0
        %v1360 = vsel %vm662, %v1335, 0
        %v1363 = vsel %vm662, %v1336, 0
        %v1366 = vsel %vm662, %v1337, 0
        %v1369 = vsel %vm662, %v1338, 0
        %v1372 = vsel %vm662, %v1339, 0
        %v1375 = vsel %vm662, %v1340, 0
        %v1378 = vsel %vm662, %v1341, 0
        %v1381 = vsel %vm662, %v1342, 0
        %v1384 = vsel %vm662, %v1343, 0
        %v1387 = vsel %vm662, %v1344, 0
        %v1390 = vsel %vm662, %v1345, 0
        %v1393 = vsel %vm662, %v1346, 0
        %v1396 = vsel %vm711, %v219, 0
        %1398 = vmatprep.subr.bf16.mxu0 0
        %1399 = vmatpush1.bf16.msra.mxu0 %v1396
        %1400 = vmatprep.subr.bf16.mxu0 0
        %1401 = vmatpush1.bf16.msra.mxu0 0
        %1402 = vmatprep.subr.bf16.mxu0 0
        %1403 = vmatpush1.bf16.msra.mxu0 0
        %1404 = vmatprep.subr.bf16.mxu0 0
        %1405 = vmatpush1.bf16.msra.mxu0 0
        %1406 = vmatprep.subr.bf16.mxu0 0
        %1407 = vmatpush1.bf16.msra.mxu0 0
        %1408 = vmatprep.subr.bf16.mxu0 0
        %1409 = vmatpush1.bf16.msra.mxu0 0
        %1410 = vmatprep.subr.bf16.mxu0 0
        %1411 = vmatpush1.bf16.msra.mxu0 0
        %1412 = vmatprep.subr.bf16.mxu0 0
        %1413 = vmatpush1.bf16.msra.mxu0 0
        %1414 = vmatprep.subr.bf16.mxu0 0
        %1415 = vmatpush1.bf16.msra.mxu0 0
        %1416 = vmatprep.subr.bf16.mxu0 0
        %1417 = vmatpush1.bf16.msra.mxu0 0
        %1418 = vmatprep.subr.bf16.mxu0 0
        %1419 = vmatpush1.bf16.msra.mxu0 0
        %1420 = vmatprep.subr.bf16.mxu0 0
        %1421 = vmatpush1.bf16.msra.mxu0 0
        %1422 = vmatprep.subr.bf16.mxu0 0
        %1423 = vmatpush1.bf16.msra.mxu0 0
        %1424 = vmatprep.subr.bf16.mxu0 0
        %1425 = vmatpush1.bf16.msra.mxu0 0
        %1426 = vmatprep.subr.bf16.mxu0 0
        %1427 = vmatpush1.bf16.msra.mxu0 0
        %1428 = vmatprep.subr.bf16.mxu0 0
        %1429 = vmatpush1.bf16.msra.mxu0 0
        %1430 = vmatprep.mubr.bf16.mxu0 0
        %1431 = vmatmul.mubr.bf16.gmra.mrb[0].mxu0 %v1348
        %v1432 = vpop.f32.mrb[0].mxu0
        %v1433 = vadd.f32 0.0, %v1432
        %v1434 = vpop.f32.mrb[0].mxu0
        %v1435 = vpop.f32.mrb[0].mxu0
        %v1436 = vadd.f32 0.0, %v1435
        %v1437 = vpop.f32.mrb[0].mxu0
        %1438 = vmatprep.mubr.bf16.mxu0 0
        %1439 = vmatmul.mubr.bf16.gmra.mrb[0].mxu0 %v1351
        %v1440 = vpop.f32.mrb[0].mxu0
        %v1441 = vadd.f32 0.0, %v1440
        %v1442 = vpop.f32.mrb[0].mxu0
        %v1443 = vpop.f32.mrb[0].mxu0
        %v1444 = vadd.f32 0.0, %v1443
        %v1445 = vpop.f32.mrb[0].mxu0
        %1446 = vmatprep.mubr.bf16.mxu0 0
        %1447 = vmatmul.mubr.bf16.gmra.mrb[0].mxu0 %v1354
        %v1448 = vpop.f32.mrb[0].mxu0
        %v1449 = vadd.f32 0.0, %v1448
        %v1450 = vpop.f32.mrb[0].mxu0
        %v1451 = vpop.f32.mrb[0].mxu0
        %v1452 = vadd.f32 0.0, %v1451
        %v1453 = vpop.f32.mrb[0].mxu0
        %1454 = vmatprep.mubr.bf16.mxu0 0
        %1455 = vmatmul.mubr.bf16.gmra.mrb[0].mxu0 %v1357
        %v1456 = vpop.f32.mrb[0].mxu0
        %v1457 = vadd.f32 0.0, %v1456
        %v1458 = vpop.f32.mrb[0].mxu0
        %v1459 = vpop.f32.mrb[0].mxu0
        %v1460 = vadd.f32 0.0, %v1459
        %v1461 = vpop.f32.mrb[0].mxu0
        %1462 = vmatprep.mubr.bf16.mxu0 0
        %1463 = vmatmul.mubr.bf16.gmra.mrb[0].mxu0 %v1360
        %v1464 = vpop.f32.mrb[0].mxu0
        %v1465 = vadd.f32 0.0, %v1464
        %v1466 = vpop.f32.mrb[0].mxu0
        %v1467 = vpop.f32.mrb[0].mxu0
        %v1468 = vadd.f32 0.0, %v1467
        %v1469 = vpop.f32.mrb[0].mxu0
        %1470 = vmatprep.mubr.bf16.mxu0 0
        %1471 = vmatmul.mubr.bf16.gmra.mrb[0].mxu0 %v1363
        %v1472 = vpop.f32.mrb[0].mxu0
        %v1473 = vadd.f32 0.0, %v1472
        %v1474 = vpop.f32.mrb[0].mxu0
        %v1475 = vpop.f32.mrb[0].mxu0
        %v1476 = vadd.f32 0.0, %v1475
        %v1477 = vpop.f32.mrb[0].mxu0
        %1478 = vmatprep.mubr.bf16.mxu0 0
        %1479 = vmatmul.mubr.bf16.gmra.mrb[0].mxu0 %v1366
        %v1480 = vpop.f32.mrb[0].mxu0
        %v1481 = vadd.f32 0.0, %v1480
        %v1482 = vpop.f32.mrb[0].mxu0
        %v1483 = vpop.f32.mrb[0].mxu0
        %v1484 = vadd.f32 0.0, %v1483
        %v1485 = vpop.f32.mrb[0].mxu0
        %1486 = vmatprep.mubr.bf16.mxu0 0
        %1487 = vmatmul.mubr.bf16.gmra.mrb[0].mxu0 %v1369
        %v1488 = vpop.f32.mrb[0].mxu0
        %v1489 = vadd.f32 0.0, %v1488
        %v1490 = vpop.f32.mrb[0].mxu0
        %v1491 = vpop.f32.mrb[0].mxu0
        %v1492 = vadd.f32 0.0, %v1491
        %v1493 = vpop.f32.mrb[0].mxu0
        %1494 = vmatprep.mubr.bf16.mxu0 0
        %1495 = vmatmul.mubr.bf16.gmra.mrb[0].mxu0 %v1372
        %v1496 = vpop.f32.mrb[0].mxu0
        %v1497 = vadd.f32 0.0, %v1496
        %v1498 = vpop.f32.mrb[0].mxu0
        %v1499 = vpop.f32.mrb[0].mxu0
        %v1500 = vadd.f32 0.0, %v1499
        %v1501 = vpop.f32.mrb[0].mxu0
        %1502 = vmatprep.mubr.bf16.mxu0 0
        %1503 = vmatmul.mubr.bf16.gmra.mrb[0].mxu0 %v1375
        %v1504 = vpop.f32.mrb[0].mxu0
        %v1505 = vadd.f32 0.0, %v1504
        %v1506 = vpop.f32.mrb[0].mxu0
        %v1507 = vpop.f32.mrb[0].mxu0
        %v1508 = vadd.f32 0.0, %v1507
        %v1509 = vpop.f32.mrb[0].mxu0
        %1510 = vmatprep.mubr.bf16.mxu0 0
        %1511 = vmatmul.mubr.bf16.gmra.mrb[0].mxu0 %v1378
        %v1512 = vpop.f32.mrb[0].mxu0
        %v1513 = vadd.f32 0.0, %v1512
        %v1514 = vpop.f32.mrb[0].mxu0
        %v1515 = vpop.f32.mrb[0].mxu0
        %v1516 = vadd.f32 0.0, %v1515
        %v1517 = vpop.f32.mrb[0].mxu0
        %1518 = vmatprep.mubr.bf16.mxu0 0
        %1519 = vmatmul.mubr.bf16.gmra.mrb[0].mxu0 %v1381
        %v1520 = vpop.f32.mrb[0].mxu0
        %v1521 = vadd.f32 0.0, %v1520
        %v1522 = vpop.f32.mrb[0].mxu0
        %v1523 = vpop.f32.mrb[0].mxu0
        %v1524 = vadd.f32 0.0, %v1523
        %v1525 = vpop.f32.mrb[0].mxu0
        %1526 = vmatprep.mubr.bf16.mxu0 0
        %1527 = vmatmul.mubr.bf16.gmra.mrb[0].mxu0 %v1384
        %v1528 = vpop.f32.mrb[0].mxu0
        %v1529 = vadd.f32 0.0, %v1528
        %v1530 = vpop.f32.mrb[0].mxu0
        %v1531 = vpop.f32.mrb[0].mxu0
        %v1532 = vadd.f32 0.0, %v1531
        %v1533 = vpop.f32.mrb[0].mxu0
        %1534 = vmatprep.mubr.bf16.mxu0 0
        %1535 = vmatmul.mubr.bf16.gmra.mrb[0].mxu0 %v1387
        %v1536 = vpop.f32.mrb[0].mxu0
        %v1537 = vadd.f32 0.0, %v1536
        %v1538 = vpop.f32.mrb[0].mxu0
        %v1539 = vpop.f32.mrb[0].mxu0
        %v1540 = vadd.f32 0.0, %v1539
        %v1541 = vpop.f32.mrb[0].mxu0
        %1542 = vmatprep.mubr.bf16.mxu0 0
        %1543 = vmatmul.mubr.bf16.gmra.mrb[0].mxu0 %v1390
        %v1544 = vpop.f32.mrb[0].mxu0
        %v1545 = vadd.f32 0.0, %v1544
        %v1546 = vpop.f32.mrb[0].mxu0
        %v1547 = vpop.f32.mrb[0].mxu0
        %v1548 = vadd.f32 0.0, %v1547
        %v1549 = vpop.f32.mrb[0].mxu0
        %1550 = vmatprep.mubr.bf16.mxu0 0
        %1551 = vmatmul.mubr.bf16.gmra.mrb[0].mxu0 %v1393
        %v1552 = vpop.f32.mrb[0].mxu0
        %v1553 = vadd.f32 0.0, %v1552
        %v1554 = vpop.f32.mrb[0].mxu0
        %v1555 = vpop.f32.mrb[0].mxu0
        %v1556 = vadd.f32 0.0, %v1555
        %v1557 = vpop.f32.mrb[0].mxu0
        %1558 = vdwg.mxu0
        %v1559 = vadd.f32 %v1042, %v1433
        %v1560 = vadd.f32 %v1045, %v1436
        %v1561 = vadd.f32 %v1050, %v1441
        %v1562 = vadd.f32 %v1053, %v1444
        %v1563 = vadd.f32 %v1058, %v1449
        %v1564 = vadd.f32 %v1061, %v1452
        %v1565 = vadd.f32 %v1066, %v1457
        %v1566 = vadd.f32 %v1069, %v1460
        %v1567 = vadd.f32 %v1074, %v1465
        %v1568 = vadd.f32 %v1077, %v1468
        %v1569 = vadd.f32 %v1082, %v1473
        %v1570 = vadd.f32 %v1085, %v1476
        %v1571 = vadd.f32 %v1090, %v1481
        %v1572 = vadd.f32 %v1093, %v1484
        %v1573 = vadd.f32 %v1098, %v1489
        %v1574 = vadd.f32 %v1101, %v1492
        %v1575 = vadd.f32 %v1106, %v1497
        %v1576 = vadd.f32 %v1109, %v1500
        %v1577 = vadd.f32 %v1114, %v1505
        %v1578 = vadd.f32 %v1117, %v1508
        %v1579 = vadd.f32 %v1122, %v1513
        %v1580 = vadd.f32 %v1125, %v1516
        %v1581 = vadd.f32 %v1130, %v1521
        %v1582 = vadd.f32 %v1133, %v1524
        %v1583 = vadd.f32 %v1138, %v1529
        %v1584 = vadd.f32 %v1141, %v1532
        %v1585 = vadd.f32 %v1146, %v1537
        %v1586 = vadd.f32 %v1149, %v1540
        %v1587 = vadd.f32 %v1154, %v1545
        %v1588 = vadd.f32 %v1157, %v1548
        %v1589 = vadd.f32 %v1162, %v1553
        %v1590 = vadd.f32 %v1165, %v1556
        %v1593 = vunpack.c.l.b16 %v212
        %v1594 = vunpack.c.l.b16 %v213
        %v1595 = vpack.c.b16 %v1594, %v1593
        %v1597 = vunpack.c.l.b16 %v219
        %v1598 = vpack.c.b16 %v1597, %v1597
        %v1599 = vrot.slane %v1598, 2
        %v1601 = vsel %vm662, %v1595, 0
        %v1604 = vsel %vm711, %v1599, 0
        %1606 = vmatprep.subr.bf16.mxu0 0
        %1607 = vmatpush1.bf16.msra.mxu0 %v1604
        %1608 = vmatprep.subr.bf16.mxu0 0
        %1609 = vmatpush1.bf16.msra.mxu0 0
        %1610 = vmatprep.subr.bf16.mxu0 0
        %1611 = vmatpush1.bf16.msra.mxu0 0
        %1612 = vmatprep.subr.bf16.mxu0 0
        %1613 = vmatpush1.bf16.msra.mxu0 0
        %1614 = vmatprep.subr.bf16.mxu0 0
        %1615 = vmatpush1.bf16.msra.mxu0 0
        %1616 = vmatprep.subr.bf16.mxu0 0
        %1617 = vmatpush1.bf16.msra.mxu0 0
        %1618 = vmatprep.subr.bf16.mxu0 0
        %1619 = vmatpush1.bf16.msra.mxu0 0
        %1620 = vmatprep.subr.bf16.mxu0 0
        %1621 = vmatpush1.bf16.msra.mxu0 0
        %1622 = vmatprep.subr.bf16.mxu0 0
        %1623 = vmatpush1.bf16.msra.mxu0 0
        %1624 = vmatprep.subr.bf16.mxu0 0
        %1625 = vmatpush1.bf16.msra.mxu0 0
        %1626 = vmatprep.subr.bf16.mxu0 0
        %1627 = vmatpush1.bf16.msra.mxu0 0
        %1628 = vmatprep.subr.bf16.mxu0 0
        %1629 = vmatpush1.bf16.msra.mxu0 0
        %1630 = vmatprep.subr.bf16.mxu0 0
        %1631 = vmatpush1.bf16.msra.mxu0 0
        %1632 = vmatprep.subr.bf16.mxu0 0
        %1633 = vmatpush1.bf16.msra.mxu0 0
        %1634 = vmatprep.subr.bf16.mxu0 0
        %1635 = vmatpush1.bf16.msra.mxu0 0
        %1636 = vmatprep.subr.bf16.mxu0 0
        %1637 = vmatpush1.bf16.msra.mxu0 0
        %1638 = vmatprep.mubr.bf16.mxu0 0
        %1639 = vmatmul.mubr.bf16.gmra.mrb[0].mxu0 %v960
        %v1640 = vpop.f32.mrb[0].mxu0
        %v1641 = vadd.f32 0.0, %v1640
        %v1642 = vpop.f32.mrb[0].mxu0
        %v1643 = vpop.f32.mrb[0].mxu0
        %v1644 = vadd.f32 0.0, %v1643
        %v1645 = vpop.f32.mrb[0].mxu0
        %1646 = vmatprep.mubr.bf16.mxu0 0
        %1647 = vmatmul.mubr.bf16.gmra.mrb[0].mxu0 %v963
        %v1648 = vpop.f32.mrb[0].mxu0
        %v1649 = vadd.f32 0.0, %v1648
        %v1650 = vpop.f32.mrb[0].mxu0
        %v1651 = vpop.f32.mrb[0].mxu0
        %v1652 = vadd.f32 0.0, %v1651
        %v1653 = vpop.f32.mrb[0].mxu0
        %1654 = vmatprep.mubr.bf16.mxu0 0
        %1655 = vmatmul.mubr.bf16.gmra.mrb[0].mxu0 %v966
        %v1656 = vpop.f32.mrb[0].mxu0
        %v1657 = vadd.f32 0.0, %v1656
        %v1658 = vpop.f32.mrb[0].mxu0
        %v1659 = vpop.f32.mrb[0].mxu0
        %v1660 = vadd.f32 0.0, %v1659
        %v1661 = vpop.f32.mrb[0].mxu0
        %1662 = vmatprep.mubr.bf16.mxu0 0
        %1663 = vmatmul.mubr.bf16.gmra.mrb[0].mxu0 %v969
        %v1664 = vpop.f32.mrb[0].mxu0
        %v1665 = vadd.f32 0.0, %v1664
        %v1666 = vpop.f32.mrb[0].mxu0
        %v1667 = vpop.f32.mrb[0].mxu0
        %v1668 = vadd.f32 0.0, %v1667
        %v1669 = vpop.f32.mrb[0].mxu0
        %1670 = vmatprep.mubr.bf16.mxu0 0
        %1671 = vmatmul.mubr.bf16.gmra.mrb[0].mxu0 %v972
        %v1672 = vpop.f32.mrb[0].mxu0
        %v1673 = vadd.f32 0.0, %v1672
        %v1674 = vpop.f32.mrb[0].mxu0
        %v1675 = vpop.f32.mrb[0].mxu0
        %v1676 = vadd.f32 0.0, %v1675
        %v1677 = vpop.f32.mrb[0].mxu0
        %1678 = vmatprep.mubr.bf16.mxu0 0
        %1679 = vmatmul.mubr.bf16.gmra.mrb[0].mxu0 %v975
        %v1680 = vpop.f32.mrb[0].mxu0
        %v1681 = vadd.f32 0.0, %v1680
        %v1682 = vpop.f32.mrb[0].mxu0
        %v1683 = vpop.f32.mrb[0].mxu0
        %v1684 = vadd.f32 0.0, %v1683
        %v1685 = vpop.f32.mrb[0].mxu0
        %1686 = vmatprep.mubr.bf16.mxu0 0
        %1687 = vmatmul.mubr.bf16.gmra.mrb[0].mxu0 %v978
        %v1688 = vpop.f32.mrb[0].mxu0
        %v1689 = vadd.f32 0.0, %v1688
        %v1690 = vpop.f32.mrb[0].mxu0
        %v1691 = vpop.f32.mrb[0].mxu0
        %v1692 = vadd.f32 0.0, %v1691
        %v1693 = vpop.f32.mrb[0].mxu0
        %1694 = vmatprep.mubr.bf16.mxu0 0
        %1695 = vmatmul.mubr.bf16.gmra.mrb[0].mxu0 %v981
        %v1696 = vpop.f32.mrb[0].mxu0
        %v1697 = vadd.f32 0.0, %v1696
        %v1698 = vpop.f32.mrb[0].mxu0
        %v1699 = vpop.f32.mrb[0].mxu0
        %v1700 = vadd.f32 0.0, %v1699
        %v1701 = vpop.f32.mrb[0].mxu0
        %1702 = vmatprep.mubr.bf16.mxu0 0
        %1703 = vmatmul.mubr.bf16.gmra.mrb[0].mxu0 %v984
        %v1704 = vpop.f32.mrb[0].mxu0
        %v1705 = vadd.f32 0.0, %v1704
        %v1706 = vpop.f32.mrb[0].mxu0
        %v1707 = vpop.f32.mrb[0].mxu0
        %v1708 = vadd.f32 0.0, %v1707
        %v1709 = vpop.f32.mrb[0].mxu0
        %1710 = vmatprep.mubr.bf16.mxu0 0
        %1711 = vmatmul.mubr.bf16.gmra.mrb[0].mxu0 %v987
        %v1712 = vpop.f32.mrb[0].mxu0
        %v1713 = vadd.f32 0.0, %v1712
        %v1714 = vpop.f32.mrb[0].mxu0
        %v1715 = vpop.f32.mrb[0].mxu0
        %v1716 = vadd.f32 0.0, %v1715
        %v1717 = vpop.f32.mrb[0].mxu0
        %1718 = vmatprep.mubr.bf16.mxu0 0
        %1719 = vmatmul.mubr.bf16.gmra.mrb[0].mxu0 %v990
        %v1720 = vpop.f32.mrb[0].mxu0
        %v1721 = vadd.f32 0.0, %v1720
        %v1722 = vpop.f32.mrb[0].mxu0
        %v1723 = vpop.f32.mrb[0].mxu0
        %v1724 = vadd.f32 0.0, %v1723
        %v1725 = vpop.f32.mrb[0].mxu0
        %1726 = vmatprep.mubr.bf16.mxu0 0
        %1727 = vmatmul.mubr.bf16.gmra.mrb[0].mxu0 %v993
        %v1728 = vpop.f32.mrb[0].mxu0
        %v1729 = vadd.f32 0.0, %v1728
        %v1730 = vpop.f32.mrb[0].mxu0
        %v1731 = vpop.f32.mrb[0].mxu0
        %v1732 = vadd.f32 0.0, %v1731
        %v1733 = vpop.f32.mrb[0].mxu0
        %1734 = vmatprep.mubr.bf16.mxu0 0
        %1735 = vmatmul.mubr.bf16.gmra.mrb[0].mxu0 %v996
        %v1736 = vpop.f32.mrb[0].mxu0
        %v1737 = vadd.f32 0.0, %v1736
        %v1738 = vpop.f32.mrb[0].mxu0
        %v1739 = vpop.f32.mrb[0].mxu0
        %v1740 = vadd.f32 0.0, %v1739
        %v1741 = vpop.f32.mrb[0].mxu0
        %1742 = vmatprep.mubr.bf16.mxu0 0
        %1743 = vmatmul.mubr.bf16.gmra.mrb[0].mxu0 %v999
        %v1744 = vpop.f32.mrb[0].mxu0
        %v1745 = vadd.f32 0.0, %v1744
        %v1746 = vpop.f32.mrb[0].mxu0
        %v1747 = vpop.f32.mrb[0].mxu0
        %v1748 = vadd.f32 0.0, %v1747
        %v1749 = vpop.f32.mrb[0].mxu0
        %1750 = vmatprep.mubr.bf16.mxu0 0
        %1751 = vmatmul.mubr.bf16.gmra.mrb[0].mxu0 %v1002
        %v1752 = vpop.f32.mrb[0].mxu0
        %v1753 = vadd.f32 0.0, %v1752
        %v1754 = vpop.f32.mrb[0].mxu0
        %v1755 = vpop.f32.mrb[0].mxu0
        %v1756 = vadd.f32 0.0, %v1755
        %v1757 = vpop.f32.mrb[0].mxu0
        %1758 = vmatprep.mubr.bf16.mxu0 0
        %1759 = vmatmul.mubr.bf16.gmra.mrb[0].mxu0 %v1601
        %v1760 = vpop.f32.mrb[0].mxu0
        %v1761 = vadd.f32 0.0, %v1760
        %v1762 = vpop.f32.mrb[0].mxu0
        %v1763 = vpop.f32.mrb[0].mxu0
        %v1764 = vadd.f32 0.0, %v1763
        %v1765 = vpop.f32.mrb[0].mxu0
        %1766 = vdwg.mxu0
        %v1767 = vadd.f32 %v1559, %v1641
        %v1768 = vadd.f32 %v1560, %v1644
        %v1769 = vadd.f32 %v1561, %v1649
        %v1770 = vadd.f32 %v1562, %v1652
        %v1771 = vadd.f32 %v1563, %v1657
        %v1772 = vadd.f32 %v1564, %v1660
        %v1773 = vadd.f32 %v1565, %v1665
        %v1774 = vadd.f32 %v1566, %v1668
        %v1775 = vadd.f32 %v1567, %v1673
        %v1776 = vadd.f32 %v1568, %v1676
        %v1777 = vadd.f32 %v1569, %v1681
        %v1778 = vadd.f32 %v1570, %v1684
        %v1779 = vadd.f32 %v1571, %v1689
        %v1780 = vadd.f32 %v1572, %v1692
        %v1781 = vadd.f32 %v1573, %v1697
        %v1782 = vadd.f32 %v1574, %v1700
        %v1783 = vadd.f32 %v1575, %v1705
        %v1784 = vadd.f32 %v1576, %v1708
        %v1785 = vadd.f32 %v1577, %v1713
        %v1786 = vadd.f32 %v1578, %v1716
        %v1787 = vadd.f32 %v1579, %v1721
        %v1788 = vadd.f32 %v1580, %v1724
        %v1789 = vadd.f32 %v1581, %v1729
        %v1790 = vadd.f32 %v1582, %v1732
        %v1791 = vadd.f32 %v1583, %v1737
        %v1792 = vadd.f32 %v1584, %v1740
        %v1793 = vadd.f32 %v1585, %v1745
        %v1794 = vadd.f32 %v1586, %v1748
        %v1795 = vadd.f32 %v1587, %v1753
        %v1796 = vadd.f32 %v1588, %v1756
        %v1797 = vadd.f32 %v1589, %v1761
        %v1798 = vadd.f32 %v1590, %v1764
        %v1800 = vshrl.u32 %v212, 16
        %v1802 = vrot.slane %v1800, 4
        %v1803 = vshll.u32 %v212, 16
        %v1805 = vrot.slane %v1803, 5
        %v1806 = vor.u32 %v1802, %v1805
        %v1807 = vrot.slane %v1806, 4
        %v1809 = vshll.u32 %v213, 16
        %v1811 = vrot.slane %v1809, 5
        %v1812 = vsel %vm225, %v1807, %v1811
        %v1813 = vshrl.u32 %v213, 16
        %v1815 = vrot.slane %v1813, 4
        %v1816 = vor.u32 %v1815, %v1811
        %v1817 = vrot.slane %v1816, 4
        %v1819 = vshll.u32 %v214, 16
        %v1821 = vrot.slane %v1819, 5
        %v1822 = vsel %vm225, %v1817, %v1821
        %v1823 = vunpack.c.l.b16 %v1812
        %v1824 = vunpack.c.l.b16 %v1822
        %v1825 = vpack.c.b16 %v1824, %v1823
        %v1827 = vsel %vm662, %v1825, 0
        %v1830 = vsel %vm711, %v220, 0
        %1832 = vmatprep.subr.bf16.mxu0 0
        %1833 = vmatpush1.bf16.msra.mxu0 %v1830
        %1834 = vmatprep.subr.bf16.mxu0 0
        %1835 = vmatpush1.bf16.msra.mxu0 0
        %1836 = vmatprep.subr.bf16.mxu0 0
        %1837 = vmatpush1.bf16.msra.mxu0 0
        %1838 = vmatprep.subr.bf16.mxu0 0
        %1839 = vmatpush1.bf16.msra.mxu0 0
        %1840 = vmatprep.subr.bf16.mxu0 0
        %1841 = vmatpush1.bf16.msra.mxu0 0
        %1842 = vmatprep.subr.bf16.mxu0 0
        %1843 = vmatpush1.bf16.msra.mxu0 0
        %1844 = vmatprep.subr.bf16.mxu0 0
        %1845 = vmatpush1.bf16.msra.mxu0 0
        %1846 = vmatprep.subr.bf16.mxu0 0
        %1847 = vmatpush1.bf16.msra.mxu0 0
        %1848 = vmatprep.subr.bf16.mxu0 0
        %1849 = vmatpush1.bf16.msra.mxu0 0
        %1850 = vmatprep.subr.bf16.mxu0 0
        %1851 = vmatpush1.bf16.msra.mxu0 0
        %1852 = vmatprep.subr.bf16.mxu0 0
        %1853 = vmatpush1.bf16.msra.mxu0 0
        %1854 = vmatprep.subr.bf16.mxu0 0
        %1855 = vmatpush1.bf16.msra.mxu0 0
        %1856 = vmatprep.subr.bf16.mxu0 0
        %1857 = vmatpush1.bf16.msra.mxu0 0
        %1858 = vmatprep.subr.bf16.mxu0 0
        %1859 = vmatpush1.bf16.msra.mxu0 0
        %1860 = vmatprep.subr.bf16.mxu0 0
        %1861 = vmatpush1.bf16.msra.mxu0 0
        %1862 = vmatprep.subr.bf16.mxu0 0
        %1863 = vmatpush1.bf16.msra.mxu0 0
        %1864 = vmatprep.mubr.bf16.mxu0 0
        %1865 = vmatmul.mubr.bf16.gmra.mrb[0].mxu0 %v667
        %v1866 = vpop.f32.mrb[0].mxu0
        %v1867 = vadd.f32 0.0, %v1866
        %v1868 = vpop.f32.mrb[0].mxu0
        %v1869 = vpop.f32.mrb[0].mxu0
        %v1870 = vadd.f32 0.0, %v1869
        %v1871 = vpop.f32.mrb[0].mxu0
        %1872 = vmatprep.mubr.bf16.mxu0 0
        %1873 = vmatmul.mubr.bf16.gmra.mrb[0].mxu0 %v670
        %v1874 = vpop.f32.mrb[0].mxu0
        %v1875 = vadd.f32 0.0, %v1874
        %v1876 = vpop.f32.mrb[0].mxu0
        %v1877 = vpop.f32.mrb[0].mxu0
        %v1878 = vadd.f32 0.0, %v1877
        %v1879 = vpop.f32.mrb[0].mxu0
        %1880 = vmatprep.mubr.bf16.mxu0 0
        %1881 = vmatmul.mubr.bf16.gmra.mrb[0].mxu0 %v673
        %v1882 = vpop.f32.mrb[0].mxu0
        %v1883 = vadd.f32 0.0, %v1882
        %v1884 = vpop.f32.mrb[0].mxu0
        %v1885 = vpop.f32.mrb[0].mxu0
        %v1886 = vadd.f32 0.0, %v1885
        %v1887 = vpop.f32.mrb[0].mxu0
        %1888 = vmatprep.mubr.bf16.mxu0 0
        %1889 = vmatmul.mubr.bf16.gmra.mrb[0].mxu0 %v676
        %v1890 = vpop.f32.mrb[0].mxu0
        %v1891 = vadd.f32 0.0, %v1890
        %v1892 = vpop.f32.mrb[0].mxu0
        %v1893 = vpop.f32.mrb[0].mxu0
        %v1894 = vadd.f32 0.0, %v1893
        %v1895 = vpop.f32.mrb[0].mxu0
        %1896 = vmatprep.mubr.bf16.mxu0 0
        %1897 = vmatmul.mubr.bf16.gmra.mrb[0].mxu0 %v679
        %v1898 = vpop.f32.mrb[0].mxu0
        %v1899 = vadd.f32 0.0, %v1898
        %v1900 = vpop.f32.mrb[0].mxu0
        %v1901 = vpop.f32.mrb[0].mxu0
        %v1902 = vadd.f32 0.0, %v1901
        %v1903 = vpop.f32.mrb[0].mxu0
        %1904 = vmatprep.mubr.bf16.mxu0 0
        %1905 = vmatmul.mubr.bf16.gmra.mrb[0].mxu0 %v682
        %v1906 = vpop.f32.mrb[0].mxu0
        %v1907 = vadd.f32 0.0, %v1906
        %v1908 = vpop.f32.mrb[0].mxu0
        %v1909 = vpop.f32.mrb[0].mxu0
        %v1910 = vadd.f32 0.0, %v1909
        %v1911 = vpop.f32.mrb[0].mxu0
        %1912 = vmatprep.mubr.bf16.mxu0 0
        %1913 = vmatmul.mubr.bf16.gmra.mrb[0].mxu0 %v685
        %v1914 = vpop.f32.mrb[0].mxu0
        %v1915 = vadd.f32 0.0, %v1914
        %v1916 = vpop.f32.mrb[0].mxu0
        %v1917 = vpop.f32.mrb[0].mxu0
        %v1918 = vadd.f32 0.0, %v1917
        %v1919 = vpop.f32.mrb[0].mxu0
        %1920 = vmatprep.mubr.bf16.mxu0 0
        %1921 = vmatmul.mubr.bf16.gmra.mrb[0].mxu0 %v688
        %v1922 = vpop.f32.mrb[0].mxu0
        %v1923 = vadd.f32 0.0, %v1922
        %v1924 = vpop.f32.mrb[0].mxu0
        %v1925 = vpop.f32.mrb[0].mxu0
        %v1926 = vadd.f32 0.0, %v1925
        %v1927 = vpop.f32.mrb[0].mxu0
        %1928 = vmatprep.mubr.bf16.mxu0 0
        %1929 = vmatmul.mubr.bf16.gmra.mrb[0].mxu0 %v691
        %v1930 = vpop.f32.mrb[0].mxu0
        %v1931 = vadd.f32 0.0, %v1930
        %v1932 = vpop.f32.mrb[0].mxu0
        %v1933 = vpop.f32.mrb[0].mxu0
        %v1934 = vadd.f32 0.0, %v1933
        %v1935 = vpop.f32.mrb[0].mxu0
        %1936 = vmatprep.mubr.bf16.mxu0 0
        %1937 = vmatmul.mubr.bf16.gmra.mrb[0].mxu0 %v694
        %v1938 = vpop.f32.mrb[0].mxu0
        %v1939 = vadd.f32 0.0, %v1938
        %v1940 = vpop.f32.mrb[0].mxu0
        %v1941 = vpop.f32.mrb[0].mxu0
        %v1942 = vadd.f32 0.0, %v1941
        %v1943 = vpop.f32.mrb[0].mxu0
        %1944 = vmatprep.mubr.bf16.mxu0 0
        %1945 = vmatmul.mubr.bf16.gmra.mrb[0].mxu0 %v697
        %v1946 = vpop.f32.mrb[0].mxu0
        %v1947 = vadd.f32 0.0, %v1946
        %v1948 = vpop.f32.mrb[0].mxu0
        %v1949 = vpop.f32.mrb[0].mxu0
        %v1950 = vadd.f32 0.0, %v1949
        %v1951 = vpop.f32.mrb[0].mxu0
        %1952 = vmatprep.mubr.bf16.mxu0 0
        %1953 = vmatmul.mubr.bf16.gmra.mrb[0].mxu0 %v700
        %v1954 = vpop.f32.mrb[0].mxu0
        %v1955 = vadd.f32 0.0, %v1954
        %v1956 = vpop.f32.mrb[0].mxu0
        %v1957 = vpop.f32.mrb[0].mxu0
        %v1958 = vadd.f32 0.0, %v1957
        %v1959 = vpop.f32.mrb[0].mxu0
        %1960 = vmatprep.mubr.bf16.mxu0 0
        %1961 = vmatmul.mubr.bf16.gmra.mrb[0].mxu0 %v703
        %v1962 = vpop.f32.mrb[0].mxu0
        %v1963 = vadd.f32 0.0, %v1962
        %v1964 = vpop.f32.mrb[0].mxu0
        %v1965 = vpop.f32.mrb[0].mxu0
        %v1966 = vadd.f32 0.0, %v1965
        %v1967 = vpop.f32.mrb[0].mxu0
        %1968 = vmatprep.mubr.bf16.mxu0 0
        %1969 = vmatmul.mubr.bf16.gmra.mrb[0].mxu0 %v706
        %v1970 = vpop.f32.mrb[0].mxu0
        %v1971 = vadd.f32 0.0, %v1970
        %v1972 = vpop.f32.mrb[0].mxu0
        %v1973 = vpop.f32.mrb[0].mxu0
        %v1974 = vadd.f32 0.0, %v1973
        %v1975 = vpop.f32.mrb[0].mxu0
        %1976 = vmatprep.mubr.bf16.mxu0 0
        %1977 = vmatmul.mubr.bf16.gmra.mrb[0].mxu0 %v709
        %v1978 = vpop.f32.mrb[0].mxu0
        %v1979 = vadd.f32 0.0, %v1978
        %v1980 = vpop.f32.mrb[0].mxu0
        %v1981 = vpop.f32.mrb[0].mxu0
        %v1982 = vadd.f32 0.0, %v1981
        %v1983 = vpop.f32.mrb[0].mxu0
        %1984 = vmatprep.mubr.bf16.mxu0 0
        %1985 = vmatmul.mubr.bf16.gmra.mrb[0].mxu0 %v1827
        %v1986 = vpop.f32.mrb[0].mxu0
        %v1987 = vadd.f32 0.0, %v1986
        %v1988 = vpop.f32.mrb[0].mxu0
        %v1989 = vpop.f32.mrb[0].mxu0
        %v1990 = vadd.f32 0.0, %v1989
        %v1991 = vpop.f32.mrb[0].mxu0
        %1992 = vdwg.mxu0
        %v1993 = vadd.f32 %v1767, %v1867
        %v1994 = vadd.f32 %v1768, %v1870
        %v1995 = vadd.f32 %v1769, %v1875
        %v1996 = vadd.f32 %v1770, %v1878
        %v1997 = vadd.f32 %v1771, %v1883
        %v1998 = vadd.f32 %v1772, %v1886
        %v1999 = vadd.f32 %v1773, %v1891
        %v2000 = vadd.f32 %v1774, %v1894
        %v2001 = vadd.f32 %v1775, %v1899
        %v2002 = vadd.f32 %v1776, %v1902
        %v2003 = vadd.f32 %v1777, %v1907
        %v2004 = vadd.f32 %v1778, %v1910
        %v2005 = vadd.f32 %v1779, %v1915
        %v2006 = vadd.f32 %v1780, %v1918
        %v2007 = vadd.f32 %v1781, %v1923
        %v2008 = vadd.f32 %v1782, %v1926
        %v2009 = vadd.f32 %v1783, %v1931
        %v2010 = vadd.f32 %v1784, %v1934
        %v2011 = vadd.f32 %v1785, %v1939
        %v2012 = vadd.f32 %v1786, %v1942
        %v2013 = vadd.f32 %v1787, %v1947
        %v2014 = vadd.f32 %v1788, %v1950
        %v2015 = vadd.f32 %v1789, %v1955
        %v2016 = vadd.f32 %v1790, %v1958
        %v2017 = vadd.f32 %v1791, %v1963
        %v2018 = vadd.f32 %v1792, %v1966
        %v2019 = vadd.f32 %v1793, %v1971
        %v2020 = vadd.f32 %v1794, %v1974
        %v2021 = vadd.f32 %v1795, %v1979
        %v2022 = vadd.f32 %v1796, %v1982
        %v2023 = vadd.f32 %v1797, %v1987
        %v2024 = vadd.f32 %v1798, %v1990
        %v2026 = vrot.slane %v212, 5
        %v2027 = vrot.slane %v2026, 4
        %v2028 = vrot.slane %v213, 5
        %v2029 = vsel %vm1186, %v2027, %v2028
        %v2030 = vrot.slane %v2028, 4
        %v2031 = vrot.slane %v214, 5
        %v2032 = vsel %vm1186, %v2030, %v2031
        %v2033 = vunpack.c.l.b16 %v2029
        %v2034 = vunpack.c.l.b16 %v2032
        %v2035 = vpack.c.b16 %v2034, %v2033
        %v2037 = vunpack.c.l.b16 %v220
        %v2038 = vpack.c.b16 %v2037, %v2037
        %v2039 = vrot.slane %v2038, 2
        %v2041 = vsel %vm662, %v2035, 0
        %v2044 = vsel %vm711, %v2039, 0
        %2046 = vmatprep.subr.bf16.mxu0 0
        %2047 = vmatpush1.bf16.msra.mxu0 %v2044
        %2048 = vmatprep.subr.bf16.mxu0 0
        %2049 = vmatpush1.bf16.msra.mxu0 0
        %2050 = vmatprep.subr.bf16.mxu0 0
        %2051 = vmatpush1.bf16.msra.mxu0 0
        %2052 = vmatprep.subr.bf16.mxu0 0
        %2053 = vmatpush1.bf16.msra.mxu0 0
        %2054 = vmatprep.subr.bf16.mxu0 0
        %2055 = vmatpush1.bf16.msra.mxu0 0
        %2056 = vmatprep.subr.bf16.mxu0 0
        %2057 = vmatpush1.bf16.msra.mxu0 0
        %2058 = vmatprep.subr.bf16.mxu0 0
        %2059 = vmatpush1.bf16.msra.mxu0 0
        %2060 = vmatprep.subr.bf16.mxu0 0
        %2061 = vmatpush1.bf16.msra.mxu0 0
        %2062 = vmatprep.subr.bf16.mxu0 0
        %2063 = vmatpush1.bf16.msra.mxu0 0
        %2064 = vmatprep.subr.bf16.mxu0 0
        %2065 = vmatpush1.bf16.msra.mxu0 0
        %2066 = vmatprep.subr.bf16.mxu0 0
        %2067 = vmatpush1.bf16.msra.mxu0 0
        %2068 = vmatprep.subr.bf16.mxu0 0
        %2069 = vmatpush1.bf16.msra.mxu0 0
        %2070 = vmatprep.subr.bf16.mxu0 0
        %2071 = vmatpush1.bf16.msra.mxu0 0
        %2072 = vmatprep.subr.bf16.mxu0 0
        %2073 = vmatpush1.bf16.msra.mxu0 0
        %2074 = vmatprep.subr.bf16.mxu0 0
        %2075 = vmatpush1.bf16.msra.mxu0 0
        %2076 = vmatprep.subr.bf16.mxu0 0
        %2077 = vmatpush1.bf16.msra.mxu0 0
        %2078 = vmatprep.mubr.bf16.mxu0 0
        %2079 = vmatmul.mubr.bf16.gmra.mrb[0].mxu0 %v1351
        %v2080 = vpop.f32.mrb[0].mxu0
        %v2081 = vadd.f32 0.0, %v2080
        %v2082 = vpop.f32.mrb[0].mxu0
        %v2083 = vpop.f32.mrb[0].mxu0
        %v2084 = vadd.f32 0.0, %v2083
        %v2085 = vpop.f32.mrb[0].mxu0
        %2086 = vmatprep.mubr.bf16.mxu0 0
        %2087 = vmatmul.mubr.bf16.gmra.mrb[0].mxu0 %v1354
        %v2088 = vpop.f32.mrb[0].mxu0
        %v2089 = vadd.f32 0.0, %v2088
        %v2090 = vpop.f32.mrb[0].mxu0
        %v2091 = vpop.f32.mrb[0].mxu0
        %v2092 = vadd.f32 0.0, %v2091
        %v2093 = vpop.f32.mrb[0].mxu0
        %2094 = vmatprep.mubr.bf16.mxu0 0
        %2095 = vmatmul.mubr.bf16.gmra.mrb[0].mxu0 %v1357
        %v2096 = vpop.f32.mrb[0].mxu0
        %v2097 = vadd.f32 0.0, %v2096
        %v2098 = vpop.f32.mrb[0].mxu0
        %v2099 = vpop.f32.mrb[0].mxu0
        %v2100 = vadd.f32 0.0, %v2099
        %v2101 = vpop.f32.mrb[0].mxu0
        %2102 = vmatprep.mubr.bf16.mxu0 0
        %2103 = vmatmul.mubr.bf16.gmra.mrb[0].mxu0 %v1360
        %v2104 = vpop.f32.mrb[0].mxu0
        %v2105 = vadd.f32 0.0, %v2104
        %v2106 = vpop.f32.mrb[0].mxu0
        %v2107 = vpop.f32.mrb[0].mxu0
        %v2108 = vadd.f32 0.0, %v2107
        %v2109 = vpop.f32.mrb[0].mxu0
        %2110 = vmatprep.mubr.bf16.mxu0 0
        %2111 = vmatmul.mubr.bf16.gmra.mrb[0].mxu0 %v1363
        %v2112 = vpop.f32.mrb[0].mxu0
        %v2113 = vadd.f32 0.0, %v2112
        %v2114 = vpop.f32.mrb[0].mxu0
        %v2115 = vpop.f32.mrb[0].mxu0
        %v2116 = vadd.f32 0.0, %v2115
        %v2117 = vpop.f32.mrb[0].mxu0
        %2118 = vmatprep.mubr.bf16.mxu0 0
        %2119 = vmatmul.mubr.bf16.gmra.mrb[0].mxu0 %v1366
        %v2120 = vpop.f32.mrb[0].mxu0
        %v2121 = vadd.f32 0.0, %v2120
        %v2122 = vpop.f32.mrb[0].mxu0
        %v2123 = vpop.f32.mrb[0].mxu0
        %v2124 = vadd.f32 0.0, %v2123
        %v2125 = vpop.f32.mrb[0].mxu0
        %2126 = vmatprep.mubr.bf16.mxu0 0
        %2127 = vmatmul.mubr.bf16.gmra.mrb[0].mxu0 %v1369
        %v2128 = vpop.f32.mrb[0].mxu0
        %v2129 = vadd.f32 0.0, %v2128
        %v2130 = vpop.f32.mrb[0].mxu0
        %v2131 = vpop.f32.mrb[0].mxu0
        %v2132 = vadd.f32 0.0, %v2131
        %v2133 = vpop.f32.mrb[0].mxu0
        %2134 = vmatprep.mubr.bf16.mxu0 0
        %2135 = vmatmul.mubr.bf16.gmra.mrb[0].mxu0 %v1372
        %v2136 = vpop.f32.mrb[0].mxu0
        %v2137 = vadd.f32 0.0, %v2136
        %v2138 = vpop.f32.mrb[0].mxu0
        %v2139 = vpop.f32.mrb[0].mxu0
        %v2140 = vadd.f32 0.0, %v2139
        %v2141 = vpop.f32.mrb[0].mxu0
        %2142 = vmatprep.mubr.bf16.mxu0 0
        %2143 = vmatmul.mubr.bf16.gmra.mrb[0].mxu0 %v1375
        %v2144 = vpop.f32.mrb[0].mxu0
        %v2145 = vadd.f32 0.0, %v2144
        %v2146 = vpop.f32.mrb[0].mxu0
        %v2147 = vpop.f32.mrb[0].mxu0
        %v2148 = vadd.f32 0.0, %v2147
        %v2149 = vpop.f32.mrb[0].mxu0
        %2150 = vmatprep.mubr.bf16.mxu0 0
        %2151 = vmatmul.mubr.bf16.gmra.mrb[0].mxu0 %v1378
        %v2152 = vpop.f32.mrb[0].mxu0
        %v2153 = vadd.f32 0.0, %v2152
        %v2154 = vpop.f32.mrb[0].mxu0
        %v2155 = vpop.f32.mrb[0].mxu0
        %v2156 = vadd.f32 0.0, %v2155
        %v2157 = vpop.f32.mrb[0].mxu0
        %2158 = vmatprep.mubr.bf16.mxu0 0
        %2159 = vmatmul.mubr.bf16.gmra.mrb[0].mxu0 %v1381
        %v2160 = vpop.f32.mrb[0].mxu0
        %v2161 = vadd.f32 0.0, %v2160
        %v2162 = vpop.f32.mrb[0].mxu0
        %v2163 = vpop.f32.mrb[0].mxu0
        %v2164 = vadd.f32 0.0, %v2163
        %v2165 = vpop.f32.mrb[0].mxu0
        %2166 = vmatprep.mubr.bf16.mxu0 0
        %2167 = vmatmul.mubr.bf16.gmra.mrb[0].mxu0 %v1384
        %v2168 = vpop.f32.mrb[0].mxu0
        %v2169 = vadd.f32 0.0, %v2168
        %v2170 = vpop.f32.mrb[0].mxu0
        %v2171 = vpop.f32.mrb[0].mxu0
        %v2172 = vadd.f32 0.0, %v2171
        %v2173 = vpop.f32.mrb[0].mxu0
        %2174 = vmatprep.mubr.bf16.mxu0 0
        %2175 = vmatmul.mubr.bf16.gmra.mrb[0].mxu0 %v1387
        %v2176 = vpop.f32.mrb[0].mxu0
        %v2177 = vadd.f32 0.0, %v2176
        %v2178 = vpop.f32.mrb[0].mxu0
        %v2179 = vpop.f32.mrb[0].mxu0
        %v2180 = vadd.f32 0.0, %v2179
        %v2181 = vpop.f32.mrb[0].mxu0
        %2182 = vmatprep.mubr.bf16.mxu0 0
        %2183 = vmatmul.mubr.bf16.gmra.mrb[0].mxu0 %v1390
        %v2184 = vpop.f32.mrb[0].mxu0
        %v2185 = vadd.f32 0.0, %v2184
        %v2186 = vpop.f32.mrb[0].mxu0
        %v2187 = vpop.f32.mrb[0].mxu0
        %v2188 = vadd.f32 0.0, %v2187
        %v2189 = vpop.f32.mrb[0].mxu0
        %2190 = vmatprep.mubr.bf16.mxu0 0
        %2191 = vmatmul.mubr.bf16.gmra.mrb[0].mxu0 %v1393
        %v2192 = vpop.f32.mrb[0].mxu0
        %v2193 = vadd.f32 0.0, %v2192
        %v2194 = vpop.f32.mrb[0].mxu0
        %v2195 = vpop.f32.mrb[0].mxu0
        %v2196 = vadd.f32 0.0, %v2195
        %v2197 = vpop.f32.mrb[0].mxu0
        %2198 = vmatprep.mubr.bf16.mxu0 0
        %2199 = vmatmul.mubr.bf16.gmra.mrb[0].mxu0 %v2041
        %v2200 = vpop.f32.mrb[0].mxu0
        %v2201 = vadd.f32 0.0, %v2200
        %v2202 = vpop.f32.mrb[0].mxu0
        %v2203 = vpop.f32.mrb[0].mxu0
        %v2204 = vadd.f32 0.0, %v2203
        %v2205 = vpop.f32.mrb[0].mxu0
        %2206 = vdwg.mxu0
        %v2207 = vadd.f32 %v1993, %v2081
        %v2208 = vadd.f32 %v1994, %v2084
        %v2209 = vadd.f32 %v1995, %v2089
        %v2210 = vadd.f32 %v1996, %v2092
        %v2211 = vadd.f32 %v1997, %v2097
        %v2212 = vadd.f32 %v1998, %v2100
        %v2213 = vadd.f32 %v1999, %v2105
        %v2214 = vadd.f32 %v2000, %v2108
        %v2215 = vadd.f32 %v2001, %v2113
        %v2216 = vadd.f32 %v2002, %v2116
        %v2217 = vadd.f32 %v2003, %v2121
        %v2218 = vadd.f32 %v2004, %v2124
        %v2219 = vadd.f32 %v2005, %v2129
        %v2220 = vadd.f32 %v2006, %v2132
        %v2221 = vadd.f32 %v2007, %v2137
        %v2222 = vadd.f32 %v2008, %v2140
        %v2223 = vadd.f32 %v2009, %v2145
        %v2224 = vadd.f32 %v2010, %v2148
        %v2225 = vadd.f32 %v2011, %v2153
        %v2226 = vadd.f32 %v2012, %v2156
        %v2227 = vadd.f32 %v2013, %v2161
        %v2228 = vadd.f32 %v2014, %v2164
        %v2229 = vadd.f32 %v2015, %v2169
        %v2230 = vadd.f32 %v2016, %v2172
        %v2231 = vadd.f32 %v2017, %v2177
        %v2232 = vadd.f32 %v2018, %v2180
        %v2233 = vadd.f32 %v2019, %v2185
        %v2234 = vadd.f32 %v2020, %v2188
        %v2235 = vadd.f32 %v2021, %v2193
        %v2236 = vadd.f32 %v2022, %v2196
        %v2237 = vadd.f32 %v2023, %v2201
        %v2238 = vadd.f32 %v2024, %v2204
        %v2241 = vunpack.c.l.b16 %v215
        %v2242 = vunpack.c.l.b16 %v216
        %v2243 = vpack.c.b16 %v2242, %v2241
        %v2245 = vsel %vm662, %v2243, 0
        %v2248 = vsel %vm711, %v221, 0
        %2250 = vmatprep.subr.bf16.mxu0 0
        %2251 = vmatpush1.bf16.msra.mxu0 %v2248
        %2252 = vmatprep.subr.bf16.mxu0 0
        %2253 = vmatpush1.bf16.msra.mxu0 0
        %2254 = vmatprep.subr.bf16.mxu0 0
        %2255 = vmatpush1.bf16.msra.mxu0 0
        %2256 = vmatprep.subr.bf16.mxu0 0
        %2257 = vmatpush1.bf16.msra.mxu0 0
        %2258 = vmatprep.subr.bf16.mxu0 0
        %2259 = vmatpush1.bf16.msra.mxu0 0
        %2260 = vmatprep.subr.bf16.mxu0 0
        %2261 = vmatpush1.bf16.msra.mxu0 0
        %2262 = vmatprep.subr.bf16.mxu0 0
        %2263 = vmatpush1.bf16.msra.mxu0 0
        %2264 = vmatprep.subr.bf16.mxu0 0
        %2265 = vmatpush1.bf16.msra.mxu0 0
        %2266 = vmatprep.subr.bf16.mxu0 0
        %2267 = vmatpush1.bf16.msra.mxu0 0
        %2268 = vmatprep.subr.bf16.mxu0 0
        %2269 = vmatpush1.bf16.msra.mxu0 0
        %2270 = vmatprep.subr.bf16.mxu0 0
        %2271 = vmatpush1.bf16.msra.mxu0 0
        %2272 = vmatprep.subr.bf16.mxu0 0
        %2273 = vmatpush1.bf16.msra.mxu0 0
        %2274 = vmatprep.subr.bf16.mxu0 0
        %2275 = vmatpush1.bf16.msra.mxu0 0
        %2276 = vmatprep.subr.bf16.mxu0 0
        %2277 = vmatpush1.bf16.msra.mxu0 0
        %2278 = vmatprep.subr.bf16.mxu0 0
        %2279 = vmatpush1.bf16.msra.mxu0 0
        %2280 = vmatprep.subr.bf16.mxu0 0
        %2281 = vmatpush1.bf16.msra.mxu0 0
        %2282 = vmatprep.mubr.bf16.mxu0 0
        %2283 = vmatmul.mubr.bf16.gmra.mrb[0].mxu0 %v963
        %v2284 = vpop.f32.mrb[0].mxu0
        %v2285 = vadd.f32 0.0, %v2284
        %v2286 = vpop.f32.mrb[0].mxu0
        %v2287 = vpop.f32.mrb[0].mxu0
        %v2288 = vadd.f32 0.0, %v2287
        %v2289 = vpop.f32.mrb[0].mxu0
        %2290 = vmatprep.mubr.bf16.mxu0 0
        %2291 = vmatmul.mubr.bf16.gmra.mrb[0].mxu0 %v966
        %v2292 = vpop.f32.mrb[0].mxu0
        %v2293 = vadd.f32 0.0, %v2292
        %v2294 = vpop.f32.mrb[0].mxu0
        %v2295 = vpop.f32.mrb[0].mxu0
        %v2296 = vadd.f32 0.0, %v2295
        %v2297 = vpop.f32.mrb[0].mxu0
        %2298 = vmatprep.mubr.bf16.mxu0 0
        %2299 = vmatmul.mubr.bf16.gmra.mrb[0].mxu0 %v969
        %v2300 = vpop.f32.mrb[0].mxu0
        %v2301 = vadd.f32 0.0, %v2300
        %v2302 = vpop.f32.mrb[0].mxu0
        %v2303 = vpop.f32.mrb[0].mxu0
        %v2304 = vadd.f32 0.0, %v2303
        %v2305 = vpop.f32.mrb[0].mxu0
        %2306 = vmatprep.mubr.bf16.mxu0 0
        %2307 = vmatmul.mubr.bf16.gmra.mrb[0].mxu0 %v972
        %v2308 = vpop.f32.mrb[0].mxu0
        %v2309 = vadd.f32 0.0, %v2308
        %v2310 = vpop.f32.mrb[0].mxu0
        %v2311 = vpop.f32.mrb[0].mxu0
        %v2312 = vadd.f32 0.0, %v2311
        %v2313 = vpop.f32.mrb[0].mxu0
        %2314 = vmatprep.mubr.bf16.mxu0 0
        %2315 = vmatmul.mubr.bf16.gmra.mrb[0].mxu0 %v975
        %v2316 = vpop.f32.mrb[0].mxu0
        %v2317 = vadd.f32 0.0, %v2316
        %v2318 = vpop.f32.mrb[0].mxu0
        %v2319 = vpop.f32.mrb[0].mxu0
        %v2320 = vadd.f32 0.0, %v2319
        %v2321 = vpop.f32.mrb[0].mxu0
        %2322 = vmatprep.mubr.bf16.mxu0 0
        %2323 = vmatmul.mubr.bf16.gmra.mrb[0].mxu0 %v978
        %v2324 = vpop.f32.mrb[0].mxu0
        %v2325 = vadd.f32 0.0, %v2324
        %v2326 = vpop.f32.mrb[0].mxu0
        %v2327 = vpop.f32.mrb[0].mxu0
        %v2328 = vadd.f32 0.0, %v2327
        %v2329 = vpop.f32.mrb[0].mxu0
        %2330 = vmatprep.mubr.bf16.mxu0 0
        %2331 = vmatmul.mubr.bf16.gmra.mrb[0].mxu0 %v981
        %v2332 = vpop.f32.mrb[0].mxu0
        %v2333 = vadd.f32 0.0, %v2332
        %v2334 = vpop.f32.mrb[0].mxu0
        %v2335 = vpop.f32.mrb[0].mxu0
        %v2336 = vadd.f32 0.0, %v2335
        %v2337 = vpop.f32.mrb[0].mxu0
        %2338 = vmatprep.mubr.bf16.mxu0 0
        %2339 = vmatmul.mubr.bf16.gmra.mrb[0].mxu0 %v984
        %v2340 = vpop.f32.mrb[0].mxu0
        %v2341 = vadd.f32 0.0, %v2340
        %v2342 = vpop.f32.mrb[0].mxu0
        %v2343 = vpop.f32.mrb[0].mxu0
        %v2344 = vadd.f32 0.0, %v2343
        %v2345 = vpop.f32.mrb[0].mxu0
        %2346 = vmatprep.mubr.bf16.mxu0 0
        %2347 = vmatmul.mubr.bf16.gmra.mrb[0].mxu0 %v987
        %v2348 = vpop.f32.mrb[0].mxu0
        %v2349 = vadd.f32 0.0, %v2348
        %v2350 = vpop.f32.mrb[0].mxu0
        %v2351 = vpop.f32.mrb[0].mxu0
        %v2352 = vadd.f32 0.0, %v2351
        %v2353 = vpop.f32.mrb[0].mxu0
        %2354 = vmatprep.mubr.bf16.mxu0 0
        %2355 = vmatmul.mubr.bf16.gmra.mrb[0].mxu0 %v990
        %v2356 = vpop.f32.mrb[0].mxu0
        %v2357 = vadd.f32 0.0, %v2356
        %v2358 = vpop.f32.mrb[0].mxu0
        %v2359 = vpop.f32.mrb[0].mxu0
        %v2360 = vadd.f32 0.0, %v2359
        %v2361 = vpop.f32.mrb[0].mxu0
        %2362 = vmatprep.mubr.bf16.mxu0 0
        %2363 = vmatmul.mubr.bf16.gmra.mrb[0].mxu0 %v993
        %v2364 = vpop.f32.mrb[0].mxu0
        %v2365 = vadd.f32 0.0, %v2364
        %v2366 = vpop.f32.mrb[0].mxu0
        %v2367 = vpop.f32.mrb[0].mxu0
        %v2368 = vadd.f32 0.0, %v2367
        %v2369 = vpop.f32.mrb[0].mxu0
        %2370 = vmatprep.mubr.bf16.mxu0 0
        %2371 = vmatmul.mubr.bf16.gmra.mrb[0].mxu0 %v996
        %v2372 = vpop.f32.mrb[0].mxu0
        %v2373 = vadd.f32 0.0, %v2372
        %v2374 = vpop.f32.mrb[0].mxu0
        %v2375 = vpop.f32.mrb[0].mxu0
        %v2376 = vadd.f32 0.0, %v2375
        %v2377 = vpop.f32.mrb[0].mxu0
        %2378 = vmatprep.mubr.bf16.mxu0 0
        %2379 = vmatmul.mubr.bf16.gmra.mrb[0].mxu0 %v999
        %v2380 = vpop.f32.mrb[0].mxu0
        %v2381 = vadd.f32 0.0, %v2380
        %v2382 = vpop.f32.mrb[0].mxu0
        %v2383 = vpop.f32.mrb[0].mxu0
        %v2384 = vadd.f32 0.0, %v2383
        %v2385 = vpop.f32.mrb[0].mxu0
        %2386 = vmatprep.mubr.bf16.mxu0 0
        %2387 = vmatmul.mubr.bf16.gmra.mrb[0].mxu0 %v1002
        %v2388 = vpop.f32.mrb[0].mxu0
        %v2389 = vadd.f32 0.0, %v2388
        %v2390 = vpop.f32.mrb[0].mxu0
        %v2391 = vpop.f32.mrb[0].mxu0
        %v2392 = vadd.f32 0.0, %v2391
        %v2393 = vpop.f32.mrb[0].mxu0
        %2394 = vmatprep.mubr.bf16.mxu0 0
        %2395 = vmatmul.mubr.bf16.gmra.mrb[0].mxu0 %v1601
        %v2396 = vpop.f32.mrb[0].mxu0
        %v2397 = vadd.f32 0.0, %v2396
        %v2398 = vpop.f32.mrb[0].mxu0
        %v2399 = vpop.f32.mrb[0].mxu0
        %v2400 = vadd.f32 0.0, %v2399
        %v2401 = vpop.f32.mrb[0].mxu0
        %2402 = vmatprep.mubr.bf16.mxu0 0
        %2403 = vmatmul.mubr.bf16.gmra.mrb[0].mxu0 %v2245
        %v2404 = vpop.f32.mrb[0].mxu0
        %v2405 = vadd.f32 0.0, %v2404
        %v2406 = vpop.f32.mrb[0].mxu0
        %v2407 = vpop.f32.mrb[0].mxu0
        %v2408 = vadd.f32 0.0, %v2407
        %v2409 = vpop.f32.mrb[0].mxu0
        %2410 = vdwg.mxu0
        %v2411 = vadd.f32 %v2207, %v2285
        %v2412 = vadd.f32 %v2208, %v2288
        %v2413 = vadd.f32 %v2209, %v2293
        %v2414 = vadd.f32 %v2210, %v2296
        %v2415 = vadd.f32 %v2211, %v2301
        %v2416 = vadd.f32 %v2212, %v2304
        %v2417 = vadd.f32 %v2213, %v2309
        %v2418 = vadd.f32 %v2214, %v2312
        %v2419 = vadd.f32 %v2215, %v2317
        %v2420 = vadd.f32 %v2216, %v2320
        %v2421 = vadd.f32 %v2217, %v2325
        %v2422 = vadd.f32 %v2218, %v2328
        %v2423 = vadd.f32 %v2219, %v2333
        %v2424 = vadd.f32 %v2220, %v2336
        %v2425 = vadd.f32 %v2221, %v2341
        %v2426 = vadd.f32 %v2222, %v2344
        %v2427 = vadd.f32 %v2223, %v2349
        %v2428 = vadd.f32 %v2224, %v2352
        %v2429 = vadd.f32 %v2225, %v2357
        %v2430 = vadd.f32 %v2226, %v2360
        %v2431 = vadd.f32 %v2227, %v2365
        %v2432 = vadd.f32 %v2228, %v2368
        %v2433 = vadd.f32 %v2229, %v2373
        %v2434 = vadd.f32 %v2230, %v2376
        %v2435 = vadd.f32 %v2231, %v2381
        %v2436 = vadd.f32 %v2232, %v2384
        %v2437 = vadd.f32 %v2233, %v2389
        %v2438 = vadd.f32 %v2234, %v2392
        %v2439 = vadd.f32 %v2235, %v2397
        %v2440 = vadd.f32 %v2236, %v2400
        %v2441 = vadd.f32 %v2237, %v2405
        %v2442 = vadd.f32 %v2238, %v2408
        %v2444 = vshrl.u32 %v215, 16
        %v2446 = vrot.slane %v2444, 4
        %v2447 = vshll.u32 %v215, 16
        %v2449 = vrot.slane %v2447, 5
        %v2450 = vor.u32 %v2446, %v2449
        %v2451 = vrot.slane %v2450, 4
        %v2453 = vshll.u32 %v216, 16
        %v2455 = vrot.slane %v2453, 5
        %v2456 = vsel %vm225, %v2451, %v2455
        %v2457 = vshrl.u32 %v216, 16
        %v2459 = vrot.slane %v2457, 4
        %v2460 = vor.u32 %v2459, %v2455
        %v2461 = vrot.slane %v2460, 4
        %v2463 = vshll.u32 %v217, 16
        %v2465 = vrot.slane %v2463, 5
        %v2466 = vsel %vm225, %v2461, %v2465
        %v2467 = vunpack.c.l.b16 %v2456
        %v2468 = vunpack.c.l.b16 %v2466
        %v2469 = vpack.c.b16 %v2468, %v2467
        %v2471 = vunpack.c.l.b16 %v221
        %v2472 = vpack.c.b16 %v2471, %v2471
        %v2473 = vrot.slane %v2472, 2
        %v2475 = vsel %vm662, %v2469, 0
        %v2478 = vsel %vm711, %v2473, 0
        %2480 = vmatprep.subr.bf16.mxu0 0
        %2481 = vmatpush1.bf16.msra.mxu0 %v2478
        %2482 = vmatprep.subr.bf16.mxu0 0
        %2483 = vmatpush1.bf16.msra.mxu0 0
        %2484 = vmatprep.subr.bf16.mxu0 0
        %2485 = vmatpush1.bf16.msra.mxu0 0
        %2486 = vmatprep.subr.bf16.mxu0 0
        %2487 = vmatpush1.bf16.msra.mxu0 0
        %2488 = vmatprep.subr.bf16.mxu0 0
        %2489 = vmatpush1.bf16.msra.mxu0 0
        %2490 = vmatprep.subr.bf16.mxu0 0
        %2491 = vmatpush1.bf16.msra.mxu0 0
        %2492 = vmatprep.subr.bf16.mxu0 0
        %2493 = vmatpush1.bf16.msra.mxu0 0
        %2494 = vmatprep.subr.bf16.mxu0 0
        %2495 = vmatpush1.bf16.msra.mxu0 0
        %2496 = vmatprep.subr.bf16.mxu0 0
        %2497 = vmatpush1.bf16.msra.mxu0 0
        %2498 = vmatprep.subr.bf16.mxu0 0
        %2499 = vmatpush1.bf16.msra.mxu0 0
        %2500 = vmatprep.subr.bf16.mxu0 0
        %2501 = vmatpush1.bf16.msra.mxu0 0
        %2502 = vmatprep.subr.bf16.mxu0 0
        %2503 = vmatpush1.bf16.msra.mxu0 0
        %2504 = vmatprep.subr.bf16.mxu0 0
        %2505 = vmatpush1.bf16.msra.mxu0 0
        %2506 = vmatprep.subr.bf16.mxu0 0
        %2507 = vmatpush1.bf16.msra.mxu0 0
        %2508 = vmatprep.subr.bf16.mxu0 0
        %2509 = vmatpush1.bf16.msra.mxu0 0
        %2510 = vmatprep.subr.bf16.mxu0 0
        %2511 = vmatpush1.bf16.msra.mxu0 0
        %2512 = vmatprep.mubr.bf16.mxu0 0
        %2513 = vmatmul.mubr.bf16.gmra.mrb[0].mxu0 %v670
        %v2514 = vpop.f32.mrb[0].mxu0
        %v2515 = vadd.f32 0.0, %v2514
        %v2516 = vpop.f32.mrb[0].mxu0
        %v2517 = vpop.f32.mrb[0].mxu0
        %v2518 = vadd.f32 0.0, %v2517
        %v2519 = vpop.f32.mrb[0].mxu0
        %2520 = vmatprep.mubr.bf16.mxu0 0
        %2521 = vmatmul.mubr.bf16.gmra.mrb[0].mxu0 %v673
        %v2522 = vpop.f32.mrb[0].mxu0
        %v2523 = vadd.f32 0.0, %v2522
        %v2524 = vpop.f32.mrb[0].mxu0
        %v2525 = vpop.f32.mrb[0].mxu0
        %v2526 = vadd.f32 0.0, %v2525
        %v2527 = vpop.f32.mrb[0].mxu0
        %2528 = vmatprep.mubr.bf16.mxu0 0
        %2529 = vmatmul.mubr.bf16.gmra.mrb[0].mxu0 %v676
        %v2530 = vpop.f32.mrb[0].mxu0
        %v2531 = vadd.f32 0.0, %v2530
        %v2532 = vpop.f32.mrb[0].mxu0
        %v2533 = vpop.f32.mrb[0].mxu0
        %v2534 = vadd.f32 0.0, %v2533
        %v2535 = vpop.f32.mrb[0].mxu0
        %2536 = vmatprep.mubr.bf16.mxu0 0
        %2537 = vmatmul.mubr.bf16.gmra.mrb[0].mxu0 %v679
        %v2538 = vpop.f32.mrb[0].mxu0
        %v2539 = vadd.f32 0.0, %v2538
        %v2540 = vpop.f32.mrb[0].mxu0
        %v2541 = vpop.f32.mrb[0].mxu0
        %v2542 = vadd.f32 0.0, %v2541
        %v2543 = vpop.f32.mrb[0].mxu0
        %2544 = vmatprep.mubr.bf16.mxu0 0
        %2545 = vmatmul.mubr.bf16.gmra.mrb[0].mxu0 %v682
        %v2546 = vpop.f32.mrb[0].mxu0
        %v2547 = vadd.f32 0.0, %v2546
        %v2548 = vpop.f32.mrb[0].mxu0
        %v2549 = vpop.f32.mrb[0].mxu0
        %v2550 = vadd.f32 0.0, %v2549
        %v2551 = vpop.f32.mrb[0].mxu0
        %2552 = vmatprep.mubr.bf16.mxu0 0
        %2553 = vmatmul.mubr.bf16.gmra.mrb[0].mxu0 %v685
        %v2554 = vpop.f32.mrb[0].mxu0
        %v2555 = vadd.f32 0.0, %v2554
        %v2556 = vpop.f32.mrb[0].mxu0
        %v2557 = vpop.f32.mrb[0].mxu0
        %v2558 = vadd.f32 0.0, %v2557
        %v2559 = vpop.f32.mrb[0].mxu0
        %2560 = vmatprep.mubr.bf16.mxu0 0
        %2561 = vmatmul.mubr.bf16.gmra.mrb[0].mxu0 %v688
        %v2562 = vpop.f32.mrb[0].mxu0
        %v2563 = vadd.f32 0.0, %v2562
        %v2564 = vpop.f32.mrb[0].mxu0
        %v2565 = vpop.f32.mrb[0].mxu0
        %v2566 = vadd.f32 0.0, %v2565
        %v2567 = vpop.f32.mrb[0].mxu0
        %2568 = vmatprep.mubr.bf16.mxu0 0
        %2569 = vmatmul.mubr.bf16.gmra.mrb[0].mxu0 %v691
        %v2570 = vpop.f32.mrb[0].mxu0
        %v2571 = vadd.f32 0.0, %v2570
        %v2572 = vpop.f32.mrb[0].mxu0
        %v2573 = vpop.f32.mrb[0].mxu0
        %v2574 = vadd.f32 0.0, %v2573
        %v2575 = vpop.f32.mrb[0].mxu0
        %2576 = vmatprep.mubr.bf16.mxu0 0
        %2577 = vmatmul.mubr.bf16.gmra.mrb[0].mxu0 %v694
        %v2578 = vpop.f32.mrb[0].mxu0
        %v2579 = vadd.f32 0.0, %v2578
        %v2580 = vpop.f32.mrb[0].mxu0
        %v2581 = vpop.f32.mrb[0].mxu0
        %v2582 = vadd.f32 0.0, %v2581
        %v2583 = vpop.f32.mrb[0].mxu0
        %2584 = vmatprep.mubr.bf16.mxu0 0
        %2585 = vmatmul.mubr.bf16.gmra.mrb[0].mxu0 %v697
        %v2586 = vpop.f32.mrb[0].mxu0
        %v2587 = vadd.f32 0.0, %v2586
        %v2588 = vpop.f32.mrb[0].mxu0
        %v2589 = vpop.f32.mrb[0].mxu0
        %v2590 = vadd.f32 0.0, %v2589
        %v2591 = vpop.f32.mrb[0].mxu0
        %2592 = vmatprep.mubr.bf16.mxu0 0
        %2593 = vmatmul.mubr.bf16.gmra.mrb[0].mxu0 %v700
        %v2594 = vpop.f32.mrb[0].mxu0
        %v2595 = vadd.f32 0.0, %v2594
        %v2596 = vpop.f32.mrb[0].mxu0
        %v2597 = vpop.f32.mrb[0].mxu0
        %v2598 = vadd.f32 0.0, %v2597
        %v2599 = vpop.f32.mrb[0].mxu0
        %2600 = vmatprep.mubr.bf16.mxu0 0
        %2601 = vmatmul.mubr.bf16.gmra.mrb[0].mxu0 %v703
        %v2602 = vpop.f32.mrb[0].mxu0
        %v2603 = vadd.f32 0.0, %v2602
        %v2604 = vpop.f32.mrb[0].mxu0
        %v2605 = vpop.f32.mrb[0].mxu0
        %v2606 = vadd.f32 0.0, %v2605
        %v2607 = vpop.f32.mrb[0].mxu0
        %2608 = vmatprep.mubr.bf16.mxu0 0
        %2609 = vmatmul.mubr.bf16.gmra.mrb[0].mxu0 %v706
        %v2610 = vpop.f32.mrb[0].mxu0
        %v2611 = vadd.f32 0.0, %v2610
        %v2612 = vpop.f32.mrb[0].mxu0
        %v2613 = vpop.f32.mrb[0].mxu0
        %v2614 = vadd.f32 0.0, %v2613
        %v2615 = vpop.f32.mrb[0].mxu0
        %2616 = vmatprep.mubr.bf16.mxu0 0
        %2617 = vmatmul.mubr.bf16.gmra.mrb[0].mxu0 %v709
        %v2618 = vpop.f32.mrb[0].mxu0
        %v2619 = vadd.f32 0.0, %v2618
        %v2620 = vpop.f32.mrb[0].mxu0
        %v2621 = vpop.f32.mrb[0].mxu0
        %v2622 = vadd.f32 0.0, %v2621
        %v2623 = vpop.f32.mrb[0].mxu0
        %2624 = vmatprep.mubr.bf16.mxu0 0
        %2625 = vmatmul.mubr.bf16.gmra.mrb[0].mxu0 %v1827
        %v2626 = vpop.f32.mrb[0].mxu0
        %v2627 = vadd.f32 0.0, %v2626
        %v2628 = vpop.f32.mrb[0].mxu0
        %v2629 = vpop.f32.mrb[0].mxu0
        %v2630 = vadd.f32 0.0, %v2629
        %v2631 = vpop.f32.mrb[0].mxu0
        %2632 = vmatprep.mubr.bf16.mxu0 0
        %2633 = vmatmul.mubr.bf16.gmra.mrb[0].mxu0 %v2475
        %v2634 = vpop.f32.mrb[0].mxu0
        %v2635 = vadd.f32 0.0, %v2634
        %v2636 = vpop.f32.mrb[0].mxu0
        %v2637 = vpop.f32.mrb[0].mxu0
        %v2638 = vadd.f32 0.0, %v2637
        %v2639 = vpop.f32.mrb[0].mxu0
        %2640 = vdwg.mxu0
        %v2641 = vadd.f32 %v2411, %v2515
        %v2642 = vadd.f32 %v2412, %v2518
        %v2643 = vadd.f32 %v2413, %v2523
        %v2644 = vadd.f32 %v2414, %v2526
        %v2645 = vadd.f32 %v2415, %v2531
        %v2646 = vadd.f32 %v2416, %v2534
        %v2647 = vadd.f32 %v2417, %v2539
        %v2648 = vadd.f32 %v2418, %v2542
        %v2649 = vadd.f32 %v2419, %v2547
        %v2650 = vadd.f32 %v2420, %v2550
        %v2651 = vadd.f32 %v2421, %v2555
        %v2652 = vadd.f32 %v2422, %v2558
        %v2653 = vadd.f32 %v2423, %v2563
        %v2654 = vadd.f32 %v2424, %v2566
        %v2655 = vadd.f32 %v2425, %v2571
        %v2656 = vadd.f32 %v2426, %v2574
        %v2657 = vadd.f32 %v2427, %v2579
        %v2658 = vadd.f32 %v2428, %v2582
        %v2659 = vadd.f32 %v2429, %v2587
        %v2660 = vadd.f32 %v2430, %v2590
        %v2661 = vadd.f32 %v2431, %v2595
        %v2662 = vadd.f32 %v2432, %v2598
        %v2663 = vadd.f32 %v2433, %v2603
        %v2664 = vadd.f32 %v2434, %v2606
        %v2665 = vadd.f32 %v2435, %v2611
        %v2666 = vadd.f32 %v2436, %v2614
        %v2667 = vadd.f32 %v2437, %v2619
        %v2668 = vadd.f32 %v2438, %v2622
        %v2669 = vadd.f32 %v2439, %v2627
        %v2670 = vadd.f32 %v2440, %v2630
        %v2671 = vadd.f32 %v2441, %v2635
        %v2672 = vadd.f32 %v2442, %v2638
        %v2674 = vrot.slane %v215, 5
        %v2675 = vrot.slane %v2674, 4
        %v2676 = vrot.slane %v216, 5
        %v2677 = vsel %vm1186, %v2675, %v2676
        %v2678 = vrot.slane %v2676, 4
        %v2679 = vrot.slane %v217, 5
        %v2680 = vsel %vm1186, %v2678, %v2679
        %v2681 = vunpack.c.l.b16 %v2677
        %v2682 = vunpack.c.l.b16 %v2680
        %v2683 = vpack.c.b16 %v2682, %v2681
        %v2685 = vsel %vm662, %v2683, 0
        %v2688 = vsel %vm711, %v222, 0
        %2690 = vmatprep.subr.bf16.mxu0 0
        %2691 = vmatpush1.bf16.msra.mxu0 %v2688
        %2692 = vmatprep.subr.bf16.mxu0 0
        %2693 = vmatpush1.bf16.msra.mxu0 0
        %2694 = vmatprep.subr.bf16.mxu0 0
        %2695 = vmatpush1.bf16.msra.mxu0 0
        %2696 = vmatprep.subr.bf16.mxu0 0
        %2697 = vmatpush1.bf16.msra.mxu0 0
        %2698 = vmatprep.subr.bf16.mxu0 0
        %2699 = vmatpush1.bf16.msra.mxu0 0
        %2700 = vmatprep.subr.bf16.mxu0 0
        %2701 = vmatpush1.bf16.msra.mxu0 0
        %2702 = vmatprep.subr.bf16.mxu0 0
        %2703 = vmatpush1.bf16.msra.mxu0 0
        %2704 = vmatprep.subr.bf16.mxu0 0
        %2705 = vmatpush1.bf16.msra.mxu0 0
        %2706 = vmatprep.subr.bf16.mxu0 0
        %2707 = vmatpush1.bf16.msra.mxu0 0
        %2708 = vmatprep.subr.bf16.mxu0 0
        %2709 = vmatpush1.bf16.msra.mxu0 0
        %2710 = vmatprep.subr.bf16.mxu0 0
        %2711 = vmatpush1.bf16.msra.mxu0 0
        %2712 = vmatprep.subr.bf16.mxu0 0
        %2713 = vmatpush1.bf16.msra.mxu0 0
        %2714 = vmatprep.subr.bf16.mxu0 0
        %2715 = vmatpush1.bf16.msra.mxu0 0
        %2716 = vmatprep.subr.bf16.mxu0 0
        %2717 = vmatpush1.bf16.msra.mxu0 0
        %2718 = vmatprep.subr.bf16.mxu0 0
        %2719 = vmatpush1.bf16.msra.mxu0 0
        %2720 = vmatprep.subr.bf16.mxu0 0
        %2721 = vmatpush1.bf16.msra.mxu0 0
        %2722 = vmatprep.mubr.bf16.mxu0 0
        %2723 = vmatmul.mubr.bf16.gmra.mrb[0].mxu0 %v1354
        %v2724 = vpop.f32.mrb[0].mxu0
        %v2725 = vadd.f32 0.0, %v2724
        %v2726 = vpop.f32.mrb[0].mxu0
        %v2727 = vpop.f32.mrb[0].mxu0
        %v2728 = vadd.f32 0.0, %v2727
        %v2729 = vpop.f32.mrb[0].mxu0
        %2730 = vmatprep.mubr.bf16.mxu0 0
        %2731 = vmatmul.mubr.bf16.gmra.mrb[0].mxu0 %v1357
        %v2732 = vpop.f32.mrb[0].mxu0
        %v2733 = vadd.f32 0.0, %v2732
        %v2734 = vpop.f32.mrb[0].mxu0
        %v2735 = vpop.f32.mrb[0].mxu0
        %v2736 = vadd.f32 0.0, %v2735
        %v2737 = vpop.f32.mrb[0].mxu0
        %2738 = vmatprep.mubr.bf16.mxu0 0
        %2739 = vmatmul.mubr.bf16.gmra.mrb[0].mxu0 %v1360
        %v2740 = vpop.f32.mrb[0].mxu0
        %v2741 = vadd.f32 0.0, %v2740
        %v2742 = vpop.f32.mrb[0].mxu0
        %v2743 = vpop.f32.mrb[0].mxu0
        %v2744 = vadd.f32 0.0, %v2743
        %v2745 = vpop.f32.mrb[0].mxu0
        %2746 = vmatprep.mubr.bf16.mxu0 0
        %2747 = vmatmul.mubr.bf16.gmra.mrb[0].mxu0 %v1363
        %v2748 = vpop.f32.mrb[0].mxu0
        %v2749 = vadd.f32 0.0, %v2748
        %v2750 = vpop.f32.mrb[0].mxu0
        %v2751 = vpop.f32.mrb[0].mxu0
        %v2752 = vadd.f32 0.0, %v2751
        %v2753 = vpop.f32.mrb[0].mxu0
        %2754 = vmatprep.mubr.bf16.mxu0 0
        %2755 = vmatmul.mubr.bf16.gmra.mrb[0].mxu0 %v1366
        %v2756 = vpop.f32.mrb[0].mxu0
        %v2757 = vadd.f32 0.0, %v2756
        %v2758 = vpop.f32.mrb[0].mxu0
        %v2759 = vpop.f32.mrb[0].mxu0
        %v2760 = vadd.f32 0.0, %v2759
        %v2761 = vpop.f32.mrb[0].mxu0
        %2762 = vmatprep.mubr.bf16.mxu0 0
        %2763 = vmatmul.mubr.bf16.gmra.mrb[0].mxu0 %v1369
        %v2764 = vpop.f32.mrb[0].mxu0
        %v2765 = vadd.f32 0.0, %v2764
        %v2766 = vpop.f32.mrb[0].mxu0
        %v2767 = vpop.f32.mrb[0].mxu0
        %v2768 = vadd.f32 0.0, %v2767
        %v2769 = vpop.f32.mrb[0].mxu0
        %2770 = vmatprep.mubr.bf16.mxu0 0
        %2771 = vmatmul.mubr.bf16.gmra.mrb[0].mxu0 %v1372
        %v2772 = vpop.f32.mrb[0].mxu0
        %v2773 = vadd.f32 0.0, %v2772
        %v2774 = vpop.f32.mrb[0].mxu0
        %v2775 = vpop.f32.mrb[0].mxu0
        %v2776 = vadd.f32 0.0, %v2775
        %v2777 = vpop.f32.mrb[0].mxu0
        %2778 = vmatprep.mubr.bf16.mxu0 0
        %2779 = vmatmul.mubr.bf16.gmra.mrb[0].mxu0 %v1375
        %v2780 = vpop.f32.mrb[0].mxu0
        %v2781 = vadd.f32 0.0, %v2780
        %v2782 = vpop.f32.mrb[0].mxu0
        %v2783 = vpop.f32.mrb[0].mxu0
        %v2784 = vadd.f32 0.0, %v2783
        %v2785 = vpop.f32.mrb[0].mxu0
        %2786 = vmatprep.mubr.bf16.mxu0 0
        %2787 = vmatmul.mubr.bf16.gmra.mrb[0].mxu0 %v1378
        %v2788 = vpop.f32.mrb[0].mxu0
        %v2789 = vadd.f32 0.0, %v2788
        %v2790 = vpop.f32.mrb[0].mxu0
        %v2791 = vpop.f32.mrb[0].mxu0
        %v2792 = vadd.f32 0.0, %v2791
        %v2793 = vpop.f32.mrb[0].mxu0
        %2794 = vmatprep.mubr.bf16.mxu0 0
        %2795 = vmatmul.mubr.bf16.gmra.mrb[0].mxu0 %v1381
        %v2796 = vpop.f32.mrb[0].mxu0
        %v2797 = vadd.f32 0.0, %v2796
        %v2798 = vpop.f32.mrb[0].mxu0
        %v2799 = vpop.f32.mrb[0].mxu0
        %v2800 = vadd.f32 0.0, %v2799
        %v2801 = vpop.f32.mrb[0].mxu0
        %2802 = vmatprep.mubr.bf16.mxu0 0
        %2803 = vmatmul.mubr.bf16.gmra.mrb[0].mxu0 %v1384
        %v2804 = vpop.f32.mrb[0].mxu0
        %v2805 = vadd.f32 0.0, %v2804
        %v2806 = vpop.f32.mrb[0].mxu0
        %v2807 = vpop.f32.mrb[0].mxu0
        %v2808 = vadd.f32 0.0, %v2807
        %v2809 = vpop.f32.mrb[0].mxu0
        %2810 = vmatprep.mubr.bf16.mxu0 0
        %2811 = vmatmul.mubr.bf16.gmra.mrb[0].mxu0 %v1387
        %v2812 = vpop.f32.mrb[0].mxu0
        %v2813 = vadd.f32 0.0, %v2812
        %v2814 = vpop.f32.mrb[0].mxu0
        %v2815 = vpop.f32.mrb[0].mxu0
        %v2816 = vadd.f32 0.0, %v2815
        %v2817 = vpop.f32.mrb[0].mxu0
        %2818 = vmatprep.mubr.bf16.mxu0 0
        %2819 = vmatmul.mubr.bf16.gmra.mrb[0].mxu0 %v1390
        %v2820 = vpop.f32.mrb[0].mxu0
        %v2821 = vadd.f32 0.0, %v2820
        %v2822 = vpop.f32.mrb[0].mxu0
        %v2823 = vpop.f32.mrb[0].mxu0
        %v2824 = vadd.f32 0.0, %v2823
        %v2825 = vpop.f32.mrb[0].mxu0
        %2826 = vmatprep.mubr.bf16.mxu0 0
        %2827 = vmatmul.mubr.bf16.gmra.mrb[0].mxu0 %v1393
        %v2828 = vpop.f32.mrb[0].mxu0
        %v2829 = vadd.f32 0.0, %v2828
        %v2830 = vpop.f32.mrb[0].mxu0
        %v2831 = vpop.f32.mrb[0].mxu0
        %v2832 = vadd.f32 0.0, %v2831
        %v2833 = vpop.f32.mrb[0].mxu0
        %2834 = vmatprep.mubr.bf16.mxu0 0
        %2835 = vmatmul.mubr.bf16.gmra.mrb[0].mxu0 %v2041
        %v2836 = vpop.f32.mrb[0].mxu0
        %v2837 = vadd.f32 0.0, %v2836
        %v2838 = vpop.f32.mrb[0].mxu0
        %v2839 = vpop.f32.mrb[0].mxu0
        %v2840 = vadd.f32 0.0, %v2839
        %v2841 = vpop.f32.mrb[0].mxu0
        %2842 = vmatprep.mubr.bf16.mxu0 0
        %2843 = vmatmul.mubr.bf16.gmra.mrb[0].mxu0 %v2685
        %v2844 = vpop.f32.mrb[0].mxu0
        %v2845 = vadd.f32 0.0, %v2844
        %v2846 = vpop.f32.mrb[0].mxu0
        %v2847 = vpop.f32.mrb[0].mxu0
        %v2848 = vadd.f32 0.0, %v2847
        %v2849 = vpop.f32.mrb[0].mxu0
        %2850 = vdwg.mxu0
        %v2851 = vadd.f32 %v2641, %v2725
        %v2852 = vadd.f32 %v2642, %v2728
        %v2853 = vadd.f32 %v2643, %v2733
        %v2854 = vadd.f32 %v2644, %v2736
        %v2855 = vadd.f32 %v2645, %v2741
        %v2856 = vadd.f32 %v2646, %v2744
        %v2857 = vadd.f32 %v2647, %v2749
        %v2858 = vadd.f32 %v2648, %v2752
        %v2859 = vadd.f32 %v2649, %v2757
        %v2860 = vadd.f32 %v2650, %v2760
        %v2861 = vadd.f32 %v2651, %v2765
        %v2862 = vadd.f32 %v2652, %v2768
        %v2863 = vadd.f32 %v2653, %v2773
        %v2864 = vadd.f32 %v2654, %v2776
        %v2865 = vadd.f32 %v2655, %v2781
        %v2866 = vadd.f32 %v2656, %v2784
        %v2867 = vadd.f32 %v2657, %v2789
        %v2868 = vadd.f32 %v2658, %v2792
        %v2869 = vadd.f32 %v2659, %v2797
        %v2870 = vadd.f32 %v2660, %v2800
        %v2871 = vadd.f32 %v2661, %v2805
        %v2872 = vadd.f32 %v2662, %v2808
        %v2873 = vadd.f32 %v2663, %v2813
        %v2874 = vadd.f32 %v2664, %v2816
        %v2875 = vadd.f32 %v2665, %v2821
        %v2876 = vadd.f32 %v2666, %v2824
        %v2877 = vadd.f32 %v2667, %v2829
        %v2878 = vadd.f32 %v2668, %v2832
        %v2879 = vadd.f32 %v2669, %v2837
        %v2880 = vadd.f32 %v2670, %v2840
        %v2881 = vadd.f32 %v2671, %v2845
        %v2882 = vadd.f32 %v2672, %v2848
        %v2883 = vadd.f32 %v2851, %v2852
        %v2884 = vadd.f32 %v2883, %v2853
        %v2885 = vadd.f32 %v2884, %v2854
        %v2886 = vadd.f32 %v2885, %v2855
        %v2887 = vadd.f32 %v2886, %v2856
        %v2888 = vadd.f32 %v2887, %v2857
        %v2889 = vadd.f32 %v2888, %v2858
        %v2890 = vadd.f32 %v2889, %v2859
        %v2891 = vadd.f32 %v2890, %v2860
        %v2892 = vadd.f32 %v2891, %v2861
        %v2893 = vadd.f32 %v2892, %v2862
        %v2894 = vadd.f32 %v2893, %v2863
        %v2895 = vadd.f32 %v2894, %v2864
        %v2896 = vadd.f32 %v2895, %v2865
        %v2897 = vadd.f32 %v2896, %v2866
        %v2898 = vadd.f32 %v2897, %v2867
        %v2899 = vadd.f32 %v2898, %v2868
        %v2900 = vadd.f32 %v2899, %v2869
        %v2901 = vadd.f32 %v2900, %v2870
        %v2902 = vadd.f32 %v2901, %v2871
        %v2903 = vadd.f32 %v2902, %v2872
        %v2904 = vadd.f32 %v2903, %v2873
        %v2905 = vadd.f32 %v2904, %v2874
        %v2906 = vadd.f32 %v2905, %v2875
        %v2907 = vadd.f32 %v2906, %v2876
        %v2908 = vadd.f32 %v2907, %v2877
        %v2909 = vadd.f32 %v2908, %v2878
        %v2910 = vadd.f32 %v2909, %v2879
        %v2911 = vadd.f32 %v2910, %v2880
        %v2912 = vadd.f32 %v2911, %v2881
        %v2913 = vadd.f32 %v2912, %v2882
        %v2914 = vrot.slane %v2913, 4
        %v2915 = vadd.f32 %v2913, %v2914
        %v2916 = vrot.slane %v2915, 2
        %v2917 = vadd.f32 %v2915, %v2916
        %v2918 = vrot.slane %v2917, 1
        %v2919 = vadd.f32 %v2917, %v2918
        %v2920 = vmul.f32 %v2851, %v2851
        %v2921 = vmul.f32 %v2852, %v2852
        %v2922 = vmul.f32 %v2853, %v2853
        %v2923 = vmul.f32 %v2854, %v2854
        %v2924 = vmul.f32 %v2855, %v2855
        %v2925 = vmul.f32 %v2856, %v2856
        %v2926 = vmul.f32 %v2857, %v2857
        %v2927 = vmul.f32 %v2858, %v2858
        %v2928 = vmul.f32 %v2859, %v2859
        %v2929 = vmul.f32 %v2860, %v2860
        %v2930 = vmul.f32 %v2861, %v2861
        %v2931 = vmul.f32 %v2862, %v2862
        %v2932 = vmul.f32 %v2863, %v2863
        %v2933 = vmul.f32 %v2864, %v2864
        %v2934 = vmul.f32 %v2865, %v2865
        %v2935 = vmul.f32 %v2866, %v2866
        %v2936 = vmul.f32 %v2867, %v2867
        %v2937 = vmul.f32 %v2868, %v2868
        %v2938 = vmul.f32 %v2869, %v2869
        %v2939 = vmul.f32 %v2870, %v2870
        %v2940 = vmul.f32 %v2871, %v2871
        %v2941 = vmul.f32 %v2872, %v2872
        %v2942 = vmul.f32 %v2873, %v2873
        %v2943 = vmul.f32 %v2874, %v2874
        %v2944 = vmul.f32 %v2875, %v2875
        %v2945 = vmul.f32 %v2876, %v2876
        %v2946 = vmul.f32 %v2877, %v2877
        %v2947 = vmul.f32 %v2878, %v2878
        %v2948 = vmul.f32 %v2879, %v2879
        %v2949 = vmul.f32 %v2880, %v2880
        %v2950 = vmul.f32 %v2881, %v2881
        %v2951 = vmul.f32 %v2882, %v2882
        %v2952 = vadd.f32 %v2920, %v2921
        %v2953 = vadd.f32 %v2952, %v2922
        %v2954 = vadd.f32 %v2953, %v2923
        %v2955 = vadd.f32 %v2954, %v2924
        %v2956 = vadd.f32 %v2955, %v2925
        %v2957 = vadd.f32 %v2956, %v2926
        %v2958 = vadd.f32 %v2957, %v2927
        %v2959 = vadd.f32 %v2958, %v2928
        %v2960 = vadd.f32 %v2959, %v2929
        %v2961 = vadd.f32 %v2960, %v2930
        %v2962 = vadd.f32 %v2961, %v2931
        %v2963 = vadd.f32 %v2962, %v2932
        %v2964 = vadd.f32 %v2963, %v2933
        %v2965 = vadd.f32 %v2964, %v2934
        %v2966 = vadd.f32 %v2965, %v2935
        %v2967 = vadd.f32 %v2966, %v2936
        %v2968 = vadd.f32 %v2967, %v2937
        %v2969 = vadd.f32 %v2968, %v2938
        %v2970 = vadd.f32 %v2969, %v2939
        %v2971 = vadd.f32 %v2970, %v2940
        %v2972 = vadd.f32 %v2971, %v2941
        %v2973 = vadd.f32 %v2972, %v2942
        %v2974 = vadd.f32 %v2973, %v2943
        %v2975 = vadd.f32 %v2974, %v2944
        %v2976 = vadd.f32 %v2975, %v2945
        %v2977 = vadd.f32 %v2976, %v2946
        %v2978 = vadd.f32 %v2977, %v2947
        %v2979 = vadd.f32 %v2978, %v2948
        %v2980 = vadd.f32 %v2979, %v2949
        %v2981 = vadd.f32 %v2980, %v2950
        %v2982 = vadd.f32 %v2981, %v2951
        %v2983 = vrot.slane %v2982, 4
        %v2984 = vadd.f32 %v2982, %v2983
        %v2985 = vrot.slane %v2984, 2
        %v2986 = vadd.f32 %v2984, %v2985
        %v2987 = vrot.slane %v2986, 1
        %v2988 = vadd.f32 %v2986, %v2987
        %v2989 = vld [vmem:[#allocation2] sm:$0xff]
        %vm2990 = vcmask 1040384
        %v2991 = vsel %vm2990, %v2919, %v2988
        %v2992 = vsel %vm711, %v2991, 0.0
        %v2993 = vadd.f32 %v2989, %v2992
        %2994 = vst [vmem:[#allocation2] sm:$0xff] %v2993
        // Predicated region
        $region33: #{tpu_custom_call.1} parent=27 // pred_check
          %p2995 = pneg %p88
        $region34: #{tpu_custom_call.1} parent=27 // pred_check_branch
          %2997 = sbr.rel (%p2995) target = $region36
        $region35: #{tpu_custom_call.1} parent=27 // pred_region
          %s2999 = ssub.s32 128, 128
          %3000 = vsyncadd [#allocation3], %s2999
          %s3002 = sshll.u32 [#allocation2], 4
          %s3003 = int_to_ptr.vmem [resolvable:$true] %s3002
          %3005 = dma.vmem_to_hbm [thread:$0]  %s3003, 128, %s2, [#allocation3]
        $region36: #{tpu_custom_call.1} parent=27 // pred_fallthru
          _
        // Predicated region
        $region37: #{tpu_custom_call.1} parent=27 // pred_check
          %p3006 = pneg %p88
        $region38: #{tpu_custom_call.1} parent=27 // pred_check_branch
          %3008 = sbr.rel (%p3006) target = $region40
        $region39: #{tpu_custom_call.1} parent=27 // pred_region
          %3009 = dma.done [#allocation3], 128
        $region40: #{tpu_custom_call.1} parent=27 // pred_fallthru
          _
      $region28: #{tpu_custom_call.1} parent=5 // pred_fallthru
        _
      %p3010 = scmp.le.s32.totalorder 2, %s9
      // Predicated region
      $region41: #{tpu_custom_call.1} parent=5 // pred_check
        %p3011 = pneg %p3010
      $region42: #{tpu_custom_call.1} parent=5 // pred_check_branch
        %3013 = sbr.rel (%p3011) target = $region44
      $region43: #{tpu_custom_call.1} parent=5 // pred_region
        %s3014 = ssub.s32 %s9, 2
      $region44: #{tpu_custom_call.1} parent=5 // pred_fallthru
        _
    $region6: #{tpu_custom_call.1} parent=1 // loop_footer
      %s13 = sadd.s32 1, %s9
    $region7: #{tpu_custom_call.1} parent=1 // loop_footer_branch
      %8 = sbr.rel target = $region3
    $region8: #{tpu_custom_call.1} parent=1 // loop_exit
      _
    %3015 = vsyncpa [#allocation3], 1
    %s3016 = scalar_lea.sflag [#allocation3], 1
    %3017 = vsyncpa %s3016, 1

</llo_original>
